<compile_context>
chip_gen: v7x
topology: tpu7x:2x2x1
jax: 0.10.0
libtpu: 0.0.40
codegen_flags: <defaults>
</compile_context>

<pallas_src>
import functools

import jax
import jax.numpy as jnp
from jax.experimental import pallas as pl
from jax.experimental.pallas import tpu as pltpu


def _round_up(x, m):
    return (x + m - 1) // m * m


def _pick_time_chunk(T):
    # Largest divisor of T that is <= 32 (longer static unroll, fewer grid steps).
    for d in range(min(T, 32), 0, -1):
        if T % d == 0:
            return d
    return 1


# ----------------------------------------------------------------------------
# Kernel 1: LSTM recurrence only (input projection already folded into igates).
#   grid = (batch_blocks, time_chunks); batch axis "parallel", time "arbitrary".
# ----------------------------------------------------------------------------
def lstm_chunk_kernel(ig_ref,     # (Tc, Bb, 4Hp) f32   precomputed x@W_ih^T + bias
                      whh_ref,    # (Hp, 4Hp)     bf16  W_hh^T (gate-wise padded)
                      hout_ref,   # (Tc, Bb, Hp)  f32   hidden states, time-major
                      h_ref,      # VMEM scratch  (Bb, Hp) f32
                      c_ref,      # VMEM scratch  (Bb, Hp) f32
                      *, tc, hp):
    @pl.when(pl.program_id(1) == 0)       # start of the sequence for this batch block
    def _():
        h_ref[...] = jnp.zeros_like(h_ref)
        c_ref[...] = jnp.zeros_like(c_ref)

    whh = whh_ref[...]
    h = h_ref[...]
    c = c_ref[...]
    for s in range(tc):                   # static, unrolled
        gates = ig_ref[s] + jnp.dot(h.astype(jnp.bfloat16), whh,
                                    preferred_element_type=jnp.float32)
        # lane-aligned gate slices (Hp is a multiple of 128)
        i_g = jax.nn.sigmoid(gates[:, 0 * hp:1 * hp])
        f_g = jax.nn.sigmoid(gates[:, 1 * hp:2 * hp])
        g_g = jnp.tanh(gates[:, 2 * hp:3 * hp])
        o_g = jax.nn.sigmoid(gates[:, 3 * hp:4 * hp])
        c = f_g * c + i_g * g_g
        h = o_g * jnp.tanh(c)
        hout_ref[s] = h                   # full (8,128)-aligned tile store
    h_ref[...] = h
    c_ref[...] = c


# ----------------------------------------------------------------------------
# Kernel 2: batched projection + log-softmax over all B*T rows (parallel grid).
# ----------------------------------------------------------------------------
def proj_logsoftmax_kernel(h_ref,    # (Rt, Hp) bf16
                           w_ref,    # (Hp, Vp) bf16
                           b_ref,    # (1, Vp)  f32   (padded vocab cols = -1e9)
                           o_ref):   # (Rt, V)        true vocab width
    logits = (jnp.dot(h_ref[...], w_ref[...],
                      preferred_element_type=jnp.float32) + b_ref[...])
    m = jnp.max(logits, axis=-1, keepdims=True)
    lse = m + jnp.log(jnp.sum(jnp.exp(logits - m), axis=-1, keepdims=True))
    v = o_ref.shape[-1]
    o_ref[...] = (logits - lse)[:, :v].astype(o_ref.dtype)


# ----------------------------------------------------------------------------
# Wrapper
# ----------------------------------------------------------------------------
def generator_forward(tokens, params, out_dtype=jnp.float32):
    """tokens: (B, T) int32.  Returns log-probs of shape (B*T, num_emb)."""
    emb_table = params["emb"]        # (V, E)
    w_ih = params["w_ih"]            # (4H, E)  PyTorch layout
    w_hh = params["w_hh"]            # (4H, H)
    bias = params["b_ih"] + params["b_hh"]   # (4H,)
    w_lin = params["w_lin"]          # (V, H)
    b_lin = params["b_lin"]          # (V,)

    B, T = tokens.shape
    V, _ = emb_table.shape
    H = w_hh.shape[1]

    Bp = _round_up(B, 8)             # sublane-align batch
    Hp = _round_up(H, 128)           # lane-align hidden (gate slices aligned)
    Vp = _round_up(V, 128)           # lane-align vocab for the MXU
    Tc = _pick_time_chunk(T)         # timesteps per grid step (divisor of T)

    # v7x megacore: split batch into two independent halves (own h/c scratch)
    # when Bp keeps every block (8,128)/bf16 tile-aligned; single block otherwise.
    nb = 2 if (Bp >= 32 and Bp % 32 == 0) else 1
    Bb = Bp // nb

    # ---- hoisted input projection: one big parallel matmul over all tokens ----
    tokens_p = jnp.pad(tokens, ((0, Bp - B), (0, 0)))                # (Bp, T)
    emb_x = emb_table[tokens_p.T]                                    # (T, Bp, E)
    ig = jnp.einsum("tbe,ge->tbg", emb_x, w_ih) + bias               # (T, Bp, 4H)
    ig = ig.reshape(T, Bp, 4, H)
    ig = jnp.pad(ig, ((0, 0), (0, 0), (0, 0), (0, Hp - H)))          # gate-wise pad
    ig = ig.reshape(T, Bp, 4 * Hp).astype(jnp.float32)               # (T, Bp, 4Hp)

    # ---- recurrent weight: gate-wise padded, bf16 for the MXU ----
    w4 = w_hh.reshape(4, H, H)
    w4 = jnp.pad(w4, ((0, 0), (0, Hp - H), (0, Hp - H)))             # (4, Hp, Hp)
    whh_p = w4.reshape(4 * Hp, Hp).T.astype(jnp.bfloat16)            # (Hp, 4Hp)

    # ---- output projection weights (bf16) + f32 bias with -1e9 vocab padding ----
    wlin_p = jnp.pad(w_lin.T, ((0, Hp - H), (0, Vp - V))).astype(jnp.bfloat16)
    blin_p = jnp.pad(b_lin, (0, Vp - V),
                     constant_values=-1e9)[None, :].astype(jnp.float32)   # (1, Vp)

    # ---- kernel 1: recurrence -> hidden states, time-major (T, Bp, Hp) ----
    lstm_kernel = functools.partial(lstm_chunk_kernel, tc=Tc, hp=Hp)
    h_all = pl.pallas_call(
        lstm_kernel,
        out_shape=jax.ShapeDtypeStruct((T, Bp, Hp), jnp.float32),
        grid_spec=pltpu.PrefetchScalarGridSpec(
            num_scalar_prefetch=0,
            grid=(nb, T // Tc),
            in_specs=[
                pl.BlockSpec((Tc, Bb, 4 * Hp), lambda b, t: (t, b, 0)),  # igates chunk
                pl.BlockSpec((Hp, 4 * Hp), lambda b, t: (0, 0)),         # W_hh^T
            ],
            out_specs=pl.BlockSpec((Tc, Bb, Hp), lambda b, t: (t, b, 0)),
            scratch_shapes=[
                pltpu.VMEM((Bb, Hp), jnp.float32),   # hidden state carry
                pltpu.VMEM((Bb, Hp), jnp.float32),   # cell state carry
            ],
        ),
        compiler_params=pltpu.CompilerParams(
            dimension_semantics=("parallel", "arbitrary"),
            vmem_limit_bytes=32 * 1024 * 1024),
    )(ig, whh_p)

    # ---- cheap H-wide reorder to PyTorch's b*T+t row order + bf16 cast ----
    M = Bp * T
    hs = jnp.transpose(h_all, (1, 0, 2)).reshape(M, Hp).astype(jnp.bfloat16)
    row_tile = 512 if M >= 512 else _round_up(M, 16)
    Mp = _round_up(M, row_tile)
    if Mp != M:
        hs = jnp.pad(hs, ((0, Mp - M), (0, 0)))

    # ---- kernel 2: batched vocab projection + log-softmax ----
    log_probs = pl.pallas_call(
        proj_logsoftmax_kernel,
        out_shape=jax.ShapeDtypeStruct((Mp, V), out_dtype),
        grid_spec=pltpu.PrefetchScalarGridSpec(
            num_scalar_prefetch=0,
            grid=(Mp // row_tile,),
            in_specs=[
                pl.BlockSpec((row_tile, Hp), lambda m: (m, 0)),    # hidden rows
                pl.BlockSpec((Hp, Vp), lambda m: (0, 0)),          # W_lin^T
                pl.BlockSpec((1, Vp), lambda m: (0, 0)),           # b_lin
            ],
            out_specs=pl.BlockSpec((row_tile, V), lambda m: (m, 0)),
        ),
        compiler_params=pltpu.CompilerParams(
            dimension_semantics=("parallel",),
            vmem_limit_bytes=64 * 1024 * 1024),
    )(hs, wlin_p, blin_p)

    # rows b*T+t for b < B are exactly the first B*T rows; vocab is already true V
    return log_probs[:B * T]


# ----------------------------------------------------------------------------
# Pure-JAX reference (mirrors torch.nn.LSTM + Linear + LogSoftmax)
# ----------------------------------------------------------------------------
def reference_forward(tokens, params):
    emb = params["emb"][tokens]                       # (B, T, E)
    B, T, _ = emb.shape
    H = params["w_hh"].shape[1]

    def step(carry, x_t):
        h, c = carry
        gates = (x_t @ params["w_ih"].T + params["b_ih"]
                 + h @ params["w_hh"].T + params["b_hh"])
        i, f, g, o = jnp.split(gates, 4, axis=-1)
        i = jax.nn.sigmoid(i)
        f = jax.nn.sigmoid(f)
        g = jnp.tanh(g)
        o = jax.nn.sigmoid(o)
        c = f * c + i * g
        h = o * jnp.tanh(c)
        return (h, c), h

    init = (jnp.zeros((B, H), jnp.float32), jnp.zeros((B, H), jnp.float32))
    _, hs = jax.lax.scan(step, init, jnp.swapaxes(emb, 0, 1))   # (T, B, H)
    hs = jnp.swapaxes(hs, 0, 1).reshape(B * T, H)
    logits = hs @ params["w_lin"].T + params["b_lin"]
    return jax.nn.log_softmax(logits, axis=-1)


# ----------------------------------------------------------------------------
# Deterministic parameter init: uniform(-0.05, 0.05), like Generator.init_params
# ----------------------------------------------------------------------------
def init_params(key, num_emb, emb_dim, hidden_dim):
    ks = jax.random.split(key, 7)
    u = lambda k, shape: jax.random.uniform(k, shape, jnp.float32, -0.05, 0.05)
    return {
        "emb":   u(ks[0], (num_emb, emb_dim)),
        "w_ih":  u(ks[1], (4 * hidden_dim, emb_dim)),
        "w_hh":  u(ks[2], (4 * hidden_dim, hidden_dim)),
        "b_ih":  u(ks[3], (4 * hidden_dim,)),
        "b_hh":  u(ks[4], (4 * hidden_dim,)),
        "w_lin": u(ks[5], (num_emb, hidden_dim)),
        "b_lin": u(ks[6], (num_emb,)),
    }


if __name__ == "__main__":
    num_emb, emb_dim, hidden_dim = 32, 16, 32
    batch, seq_len = 4, 8

    key = jax.random.PRNGKey(0)
    kp, kx = jax.random.split(key)
    params = init_params(kp, num_emb, emb_dim, hidden_dim)
    tokens = jax.random.randint(kx, (batch, seq_len), 0, num_emb, jnp.int32)

    pred = jax.block_until_ready(generator_forward(tokens, params))
    ref = jax.block_until_ready(reference_forward(tokens, params))

    assert pred.shape == (batch * seq_len, num_emb)
    # bf16 MXU operands (W_hh / W_lin / hidden) with f32 accumulation -> 1e-2 tol.
    assert jnp.allclose(pred, ref, rtol=1e-2, atol=1e-2), (
        f"max abs err {jnp.max(jnp.abs(pred - ref))}")
    print("KERNEL_OK")
</pallas_src>

<mosaic_0001>
module attributes {stable_mosaic.version = 11 : i64} {
  func.func @lstm_chunk_kernel(%arg0: i32, %arg1: i32, %arg2: memref<8x8x512xf32, #tpu.memory_space<vmem>>, %arg3: memref<128x512xbf16, #tpu.memory_space<vmem>>, %arg4: memref<8x8x128xf32, #tpu.memory_space<vmem>>, %arg5: memref<8x128xf32, #tpu.memory_space<vmem>>, %arg6: memref<8x128xf32, #tpu.memory_space<vmem>>) attributes {dimension_semantics = [#tpu.dimension_semantics<parallel>, #tpu.dimension_semantics<arbitrary>], iteration_bounds = array<i64: 1, 1>, scalar_prefetch = 0 : i64, scratch_operands = 2 : i64, tpu.core_type = #tpu.core_type<tc>, window_params = [{transform_indices = @transform_0, window_bounds = array<i64: 8, 8, 512>}, {pipeline_mode = #tpu.pipeline_mode<synchronous>, transform_indices = @transform_1, window_bounds = array<i64: 128, 512>}, {transform_indices = @transform_2, window_bounds = array<i64: 8, 8, 128>}]} {
    %c0_i32 = arith.constant 0 : i32
    %0 = arith.cmpi eq, %arg1, %c0_i32 : i32
    %1 = arith.extui %0 : i1 to i32
    %c0_i32_0 = arith.constant 0 : i32
    %2 = arith.cmpi ne, %1, %c0_i32_0 : i32
    scf.if %2 {
      %cst_82 = arith.constant 0.000000e+00 : f32
      %272 = vector.broadcast %cst_82 : f32 to vector<8x128xf32>
      %c0_83 = arith.constant 0 : index
      %c0_84 = arith.constant 0 : index
      %273 = vector.load %arg5[%c0_83, %c0_84] : memref<8x128xf32, #tpu.memory_space<vmem>>, vector<8x128xf32>
      tpu.vector_store %arg5[%c0_83, %c0_84], %272 {strides = array<i32>} : memref<8x128xf32, #tpu.memory_space<vmem>>, vector<8x128xf32>,
      %cst_85 = arith.constant 0.000000e+00 : f32
      %274 = vector.broadcast %cst_85 : f32 to vector<8x128xf32>
      %c0_86 = arith.constant 0 : index
      %c0_87 = arith.constant 0 : index
      %275 = vector.load %arg6[%c0_86, %c0_87] : memref<8x128xf32, #tpu.memory_space<vmem>>, vector<8x128xf32>
      tpu.vector_store %arg6[%c0_86, %c0_87], %274 {strides = array<i32>} : memref<8x128xf32, #tpu.memory_space<vmem>>, vector<8x128xf32>,
    } else {
    }
    %c0 = arith.constant 0 : index
    %c0_1 = arith.constant 0 : index
    %3 = vector.load %arg3[%c0, %c0_1] : memref<128x512xbf16, #tpu.memory_space<vmem>>, vector<128x512xbf16>
    %c0_2 = arith.constant 0 : index
    %c0_3 = arith.constant 0 : index
    %4 = vector.load %arg5[%c0_2, %c0_3] : memref<8x128xf32, #tpu.memory_space<vmem>>, vector<8x128xf32>
    %c0_4 = arith.constant 0 : index
    %c0_5 = arith.constant 0 : index
    %5 = vector.load %arg6[%c0_4, %c0_5] : memref<8x128xf32, #tpu.memory_space<vmem>>, vector<8x128xf32>
    %c0_6 = arith.constant 0 : index
    %c0_7 = arith.constant 0 : index
    %c0_8 = arith.constant 0 : index
    %6 = vector.load %arg2[%c0_6, %c0_7, %c0_8] : memref<8x8x512xf32, #tpu.memory_space<vmem>>, vector<1x8x512xf32>
    %7 = vector.shape_cast %6 : vector<1x8x512xf32> to vector<8x512xf32>
    %8 = arith.truncf %4 : vector<8x128xf32> to vector<8x128xbf16>
    %cst = arith.constant dense<0.000000e+00> : vector<8x512xf32>
    %9 = tpu.matmul %8, %3, %cst {dimension_numbers = #tpu.dot_dimension_numbers<[1], [0], [0], [1], [0, 0, 1, 1], [], []>} : vector<8x128xbf16>, vector<128x512xbf16>, vector<8x512xf32> -> vector<8x512xf32>
    %10 = arith.addf %7, %9 : vector<8x512xf32>
    %11 = vector.extract_strided_slice %10 {offsets = [0, 0], sizes = [8, 128], strides = [1, 1]} : vector<8x512xf32> to vector<8x128xf32>
    %12 = arith.negf %11 : vector<8x128xf32>
    %13 = math.exp %12 : vector<8x128xf32>
    %cst_9 = arith.constant 1.000000e+00 : f32
    %14 = vector.broadcast %cst_9 : f32 to vector<8x128xf32>
    %15 = arith.addf %14, %13 : vector<8x128xf32>
    %16 = arith.divf %14, %15 : vector<8x128xf32>
    %17 = vector.extract_strided_slice %10 {offsets = [0, 128], sizes = [8, 128], strides = [1, 1]} : vector<8x512xf32> to vector<8x128xf32>
    %18 = arith.negf %17 : vector<8x128xf32>
    %19 = math.exp %18 : vector<8x128xf32>
    %cst_10 = arith.constant 1.000000e+00 : f32
    %20 = vector.broadcast %cst_10 : f32 to vector<8x128xf32>
    %21 = arith.addf %20, %19 : vector<8x128xf32>
    %22 = arith.divf %20, %21 : vector<8x128xf32>
    %23 = vector.extract_strided_slice %10 {offsets = [0, 256], sizes = [8, 128], strides = [1, 1]} : vector<8x512xf32> to vector<8x128xf32>
    %24 = math.tanh %23 : vector<8x128xf32>
    %25 = vector.extract_strided_slice %10 {offsets = [0, 384], sizes = [8, 128], strides = [1, 1]} : vector<8x512xf32> to vector<8x128xf32>
    %26 = arith.negf %25 : vector<8x128xf32>
    %27 = math.exp %26 : vector<8x128xf32>
    %cst_11 = arith.constant 1.000000e+00 : f32
    %28 = vector.broadcast %cst_11 : f32 to vector<8x128xf32>
    %29 = arith.addf %28, %27 : vector<8x128xf32>
    %30 = arith.divf %28, %29 : vector<8x128xf32>
    %31 = arith.mulf %22, %5 : vector<8x128xf32>
    %32 = arith.mulf %16, %24 : vector<8x128xf32>
    %33 = arith.addf %31, %32 : vector<8x128xf32>
    %34 = math.tanh %33 : vector<8x128xf32>
    %35 = arith.mulf %30, %34 : vector<8x128xf32>
    %c0_12 = arith.constant 0 : index
    %c0_13 = arith.constant 0 : index
    %c0_14 = arith.constant 0 : index
    %36 = vector.load %arg4[%c0_12, %c0_13, %c0_14] : memref<8x8x128xf32, #tpu.memory_space<vmem>>, vector<1x8x128xf32>
    %37 = vector.shape_cast %36 : vector<1x8x128xf32> to vector<8x128xf32>
    %38 = vector.shape_cast %35 : vector<8x128xf32> to vector<1x8x128xf32>
    tpu.vector_store %arg4[%c0_12, %c0_13, %c0_14], %38 {strides = array<i32>} : memref<8x8x128xf32, #tpu.memory_space<vmem>>, vector<1x8x128xf32>,
    %c1 = arith.constant 1 : index
    %c0_15 = arith.constant 0 : index
    %c0_16 = arith.constant 0 : index
    %39 = vector.load %arg2[%c1, %c0_15, %c0_16] : memref<8x8x512xf32, #tpu.memory_space<vmem>>, vector<1x8x512xf32>
    %40 = vector.shape_cast %39 : vector<1x8x512xf32> to vector<8x512xf32>
    %41 = arith.truncf %35 : vector<8x128xf32> to vector<8x128xbf16>
    %cst_17 = arith.constant dense<0.000000e+00> : vector<8x512xf32>
    %42 = tpu.matmul %41, %3, %cst_17 {dimension_numbers = #tpu.dot_dimension_numbers<[1], [0], [0], [1], [0, 0, 1, 1], [], []>} : vector<8x128xbf16>, vector<128x512xbf16>, vector<8x512xf32> -> vector<8x512xf32>
    %43 = arith.addf %40, %42 : vector<8x512xf32>
    %44 = vector.extract_strided_slice %43 {offsets = [0, 0], sizes = [8, 128], strides = [1, 1]} : vector<8x512xf32> to vector<8x128xf32>
    %45 = arith.negf %44 : vector<8x128xf32>
    %46 = math.exp %45 : vector<8x128xf32>
    %cst_18 = arith.constant 1.000000e+00 : f32
    %47 = vector.broadcast %cst_18 : f32 to vector<8x128xf32>
    %48 = arith.addf %47, %46 : vector<8x128xf32>
    %49 = arith.divf %47, %48 : vector<8x128xf32>
    %50 = vector.extract_strided_slice %43 {offsets = [0, 128], sizes = [8, 128], strides = [1, 1]} : vector<8x512xf32> to vector<8x128xf32>
    %51 = arith.negf %50 : vector<8x128xf32>
    %52 = math.exp %51 : vector<8x128xf32>
    %cst_19 = arith.constant 1.000000e+00 : f32
    %53 = vector.broadcast %cst_19 : f32 to vector<8x128xf32>
    %54 = arith.addf %53, %52 : vector<8x128xf32>
    %55 = arith.divf %53, %54 : vector<8x128xf32>
    %56 = vector.extract_strided_slice %43 {offsets = [0, 256], sizes = [8, 128], strides = [1, 1]} : vector<8x512xf32> to vector<8x128xf32>
    %57 = math.tanh %56 : vector<8x128xf32>
    %58 = vector.extract_strided_slice %43 {offsets = [0, 384], sizes = [8, 128], strides = [1, 1]} : vector<8x512xf32> to vector<8x128xf32>
    %59 = arith.negf %58 : vector<8x128xf32>
    %60 = math.exp %59 : vector<8x128xf32>
    %cst_20 = arith.constant 1.000000e+00 : f32
    %61 = vector.broadcast %cst_20 : f32 to vector<8x128xf32>
    %62 = arith.addf %61, %60 : vector<8x128xf32>
    %63 = arith.divf %61, %62 : vector<8x128xf32>
    %64 = arith.mulf %55, %33 : vector<8x128xf32>
    %65 = arith.mulf %49, %57 : vector<8x128xf32>
    %66 = arith.addf %64, %65 : vector<8x128xf32>
    %67 = math.tanh %66 : vector<8x128xf32>
    %68 = arith.mulf %63, %67 : vector<8x128xf32>
    %c1_21 = arith.constant 1 : index
    %c0_22 = arith.constant 0 : index
    %c0_23 = arith.constant 0 : index
    %69 = vector.load %arg4[%c1_21, %c0_22, %c0_23] : memref<8x8x128xf32, #tpu.memory_space<vmem>>, vector<1x8x128xf32>
    %70 = vector.shape_cast %69 : vector<1x8x128xf32> to vector<8x128xf32>
    %71 = vector.shape_cast %68 : vector<8x128xf32> to vector<1x8x128xf32>
    tpu.vector_store %arg4[%c1_21, %c0_22, %c0_23], %71 {strides = array<i32>} : memref<8x8x128xf32, #tpu.memory_space<vmem>>, vector<1x8x128xf32>,
    %c2 = arith.constant 2 : index
    %c0_24 = arith.constant 0 : index
    %c0_25 = arith.constant 0 : index
    %72 = vector.load %arg2[%c2, %c0_24, %c0_25] : memref<8x8x512xf32, #tpu.memory_space<vmem>>, vector<1x8x512xf32>
    %73 = vector.shape_cast %72 : vector<1x8x512xf32> to vector<8x512xf32>
    %74 = arith.truncf %68 : vector<8x128xf32> to vector<8x128xbf16>
    %cst_26 = arith.constant dense<0.000000e+00> : vector<8x512xf32>
    %75 = tpu.matmul %74, %3, %cst_26 {dimension_numbers = #tpu.dot_dimension_numbers<[1], [0], [0], [1], [0, 0, 1, 1], [], []>} : vector<8x128xbf16>, vector<128x512xbf16>, vector<8x512xf32> -> vector<8x512xf32>
    %76 = arith.addf %73, %75 : vector<8x512xf32>
    %77 = vector.extract_strided_slice %76 {offsets = [0, 0], sizes = [8, 128], strides = [1, 1]} : vector<8x512xf32> to vector<8x128xf32>
    %78 = arith.negf %77 : vector<8x128xf32>
    %79 = math.exp %78 : vector<8x128xf32>
    %cst_27 = arith.constant 1.000000e+00 : f32
    %80 = vector.broadcast %cst_27 : f32 to vector<8x128xf32>
    %81 = arith.addf %80, %79 : vector<8x128xf32>
    %82 = arith.divf %80, %81 : vector<8x128xf32>
    %83 = vector.extract_strided_slice %76 {offsets = [0, 128], sizes = [8, 128], strides = [1, 1]} : vector<8x512xf32> to vector<8x128xf32>
    %84 = arith.negf %83 : vector<8x128xf32>
    %85 = math.exp %84 : vector<8x128xf32>
    %cst_28 = arith.constant 1.000000e+00 : f32
    %86 = vector.broadcast %cst_28 : f32 to vector<8x128xf32>
    %87 = arith.addf %86, %85 : vector<8x128xf32>
    %88 = arith.divf %86, %87 : vector<8x128xf32>
    %89 = vector.extract_strided_slice %76 {offsets = [0, 256], sizes = [8, 128], strides = [1, 1]} : vector<8x512xf32> to vector<8x128xf32>
    %90 = math.tanh %89 : vector<8x128xf32>
    %91 = vector.extract_strided_slice %76 {offsets = [0, 384], sizes = [8, 128], strides = [1, 1]} : vector<8x512xf32> to vector<8x128xf32>
    %92 = arith.negf %91 : vector<8x128xf32>
    %93 = math.exp %92 : vector<8x128xf32>
    %cst_29 = arith.constant 1.000000e+00 : f32
    %94 = vector.broadcast %cst_29 : f32 to vector<8x128xf32>
    %95 = arith.addf %94, %93 : vector<8x128xf32>
    %96 = arith.divf %94, %95 : vector<8x128xf32>
    %97 = arith.mulf %88, %66 : vector<8x128xf32>
    %98 = arith.mulf %82, %90 : vector<8x128xf32>
    %99 = arith.addf %97, %98 : vector<8x128xf32>
    %100 = math.tanh %99 : vector<8x128xf32>
    %101 = arith.mulf %96, %100 : vector<8x128xf32>
    %c2_30 = arith.constant 2 : index
    %c0_31 = arith.constant 0 : index
    %c0_32 = arith.constant 0 : index
    %102 = vector.load %arg4[%c2_30, %c0_31, %c0_32] : memref<8x8x128xf32, #tpu.memory_space<vmem>>, vector<1x8x128xf32>
    %103 = vector.shape_cast %102 : vector<1x8x128xf32> to vector<8x128xf32>
    %104 = vector.shape_cast %101 : vector<8x128xf32> to vector<1x8x128xf32>
    tpu.vector_store %arg4[%c2_30, %c0_31, %c0_32], %104 {strides = array<i32>} : memref<8x8x128xf32, #tpu.memory_space<vmem>>, vector<1x8x128xf32>,
    %c3 = arith.constant 3 : index
    %c0_33 = arith.constant 0 : index
    %c0_34 = arith.constant 0 : index
    %105 = vector.load %arg2[%c3, %c0_33, %c0_34] : memref<8x8x512xf32, #tpu.memory_space<vmem>>, vector<1x8x512xf32>
    %106 = vector.shape_cast %105 : vector<1x8x512xf32> to vector<8x512xf32>
    %107 = arith.truncf %101 : vector<8x128xf32> to vector<8x128xbf16>
    %cst_35 = arith.constant dense<0.000000e+00> : vector<8x512xf32>
    %108 = tpu.matmul %107, %3, %cst_35 {dimension_numbers = #tpu.dot_dimension_numbers<[1], [0], [0], [1], [0, 0, 1, 1], [], []>} : vector<8x128xbf16>, vector<128x512xbf16>, vector<8x512xf32> -> vector<8x512xf32>
    %109 = arith.addf %106, %108 : vector<8x512xf32>
    %110 = vector.extract_strided_slice %109 {offsets = [0, 0], sizes = [8, 128], strides = [1, 1]} : vector<8x512xf32> to vector<8x128xf32>
    %111 = arith.negf %110 : vector<8x128xf32>
    %112 = math.exp %111 : vector<8x128xf32>
    %cst_36 = arith.constant 1.000000e+00 : f32
    %113 = vector.broadcast %cst_36 : f32 to vector<8x128xf32>
    %114 = arith.addf %113, %112 : vector<8x128xf32>
    %115 = arith.divf %113, %114 : vector<8x128xf32>
    %116 = vector.extract_strided_slice %109 {offsets = [0, 128], sizes = [8, 128], strides = [1, 1]} : vector<8x512xf32> to vector<8x128xf32>
    %117 = arith.negf %116 : vector<8x128xf32>
    %118 = math.exp %117 : vector<8x128xf32>
    %cst_37 = arith.constant 1.000000e+00 : f32
    %119 = vector.broadcast %cst_37 : f32 to vector<8x128xf32>
    %120 = arith.addf %119, %118 : vector<8x128xf32>
    %121 = arith.divf %119, %120 : vector<8x128xf32>
    %122 = vector.extract_strided_slice %109 {offsets = [0, 256], sizes = [8, 128], strides = [1, 1]} : vector<8x512xf32> to vector<8x128xf32>
    %123 = math.tanh %122 : vector<8x128xf32>
    %124 = vector.extract_strided_slice %109 {offsets = [0, 384], sizes = [8, 128], strides = [1, 1]} : vector<8x512xf32> to vector<8x128xf32>
    %125 = arith.negf %124 : vector<8x128xf32>
    %126 = math.exp %125 : vector<8x128xf32>
    %cst_38 = arith.constant 1.000000e+00 : f32
    %127 = vector.broadcast %cst_38 : f32 to vector<8x128xf32>
    %128 = arith.addf %127, %126 : vector<8x128xf32>
    %129 = arith.divf %127, %128 : vector<8x128xf32>
    %130 = arith.mulf %121, %99 : vector<8x128xf32>
    %131 = arith.mulf %115, %123 : vector<8x128xf32>
    %132 = arith.addf %130, %131 : vector<8x128xf32>
    %133 = math.tanh %132 : vector<8x128xf32>
    %134 = arith.mulf %129, %133 : vector<8x128xf32>
    %c3_39 = arith.constant 3 : index
    %c0_40 = arith.constant 0 : index
    %c0_41 = arith.constant 0 : index
    %135 = vector.load %arg4[%c3_39, %c0_40, %c0_41] : memref<8x8x128xf32, #tpu.memory_space<vmem>>, vector<1x8x128xf32>
    %136 = vector.shape_cast %135 : vector<1x8x128xf32> to vector<8x128xf32>
    %137 = vector.shape_cast %134 : vector<8x128xf32> to vector<1x8x128xf32>
    tpu.vector_store %arg4[%c3_39, %c0_40, %c0_41], %137 {strides = array<i32>} : memref<8x8x128xf32, #tpu.memory_space<vmem>>, vector<1x8x128xf32>,
    %c4 = arith.constant 4 : index
    %c0_42 = arith.constant 0 : index
    %c0_43 = arith.constant 0 : index
    %138 = vector.load %arg2[%c4, %c0_42, %c0_43] : memref<8x8x512xf32, #tpu.memory_space<vmem>>, vector<1x8x512xf32>
    %139 = vector.shape_cast %138 : vector<1x8x512xf32> to vector<8x512xf32>
    %140 = arith.truncf %134 : vector<8x128xf32> to vector<8x128xbf16>
    %cst_44 = arith.constant dense<0.000000e+00> : vector<8x512xf32>
    %141 = tpu.matmul %140, %3, %cst_44 {dimension_numbers = #tpu.dot_dimension_numbers<[1], [0], [0], [1], [0, 0, 1, 1], [], []>} : vector<8x128xbf16>, vector<128x512xbf16>, vector<8x512xf32> -> vector<8x512xf32>
    %142 = arith.addf %139, %141 : vector<8x512xf32>
    %143 = vector.extract_strided_slice %142 {offsets = [0, 0], sizes = [8, 128], strides = [1, 1]} : vector<8x512xf32> to vector<8x128xf32>
    %144 = arith.negf %143 : vector<8x128xf32>
    %145 = math.exp %144 : vector<8x128xf32>
    %cst_45 = arith.constant 1.000000e+00 : f32
    %146 = vector.broadcast %cst_45 : f32 to vector<8x128xf32>
    %147 = arith.addf %146, %145 : vector<8x128xf32>
    %148 = arith.divf %146, %147 : vector<8x128xf32>
    %149 = vector.extract_strided_slice %142 {offsets = [0, 128], sizes = [8, 128], strides = [1, 1]} : vector<8x512xf32> to vector<8x128xf32>
    %150 = arith.negf %149 : vector<8x128xf32>
    %151 = math.exp %150 : vector<8x128xf32>
    %cst_46 = arith.constant 1.000000e+00 : f32
    %152 = vector.broadcast %cst_46 : f32 to vector<8x128xf32>
    %153 = arith.addf %152, %151 : vector<8x128xf32>
    %154 = arith.divf %152, %153 : vector<8x128xf32>
    %155 = vector.extract_strided_slice %142 {offsets = [0, 256], sizes = [8, 128], strides = [1, 1]} : vector<8x512xf32> to vector<8x128xf32>
    %156 = math.tanh %155 : vector<8x128xf32>
    %157 = vector.extract_strided_slice %142 {offsets = [0, 384], sizes = [8, 128], strides = [1, 1]} : vector<8x512xf32> to vector<8x128xf32>
    %158 = arith.negf %157 : vector<8x128xf32>
    %159 = math.exp %158 : vector<8x128xf32>
    %cst_47 = arith.constant 1.000000e+00 : f32
    %160 = vector.broadcast %cst_47 : f32 to vector<8x128xf32>
    %161 = arith.addf %160, %159 : vector<8x128xf32>
    %162 = arith.divf %160, %161 : vector<8x128xf32>
    %163 = arith.mulf %154, %132 : vector<8x128xf32>
    %164 = arith.mulf %148, %156 : vector<8x128xf32>
    %165 = arith.addf %163, %164 : vector<8x128xf32>
    %166 = math.tanh %165 : vector<8x128xf32>
    %167 = arith.mulf %162, %166 : vector<8x128xf32>
    %c4_48 = arith.constant 4 : index
    %c0_49 = arith.constant 0 : index
    %c0_50 = arith.constant 0 : index
    %168 = vector.load %arg4[%c4_48, %c0_49, %c0_50] : memref<8x8x128xf32, #tpu.memory_space<vmem>>, vector<1x8x128xf32>
    %169 = vector.shape_cast %168 : vector<1x8x128xf32> to vector<8x128xf32>
    %170 = vector.shape_cast %167 : vector<8x128xf32> to vector<1x8x128xf32>
    tpu.vector_store %arg4[%c4_48, %c0_49, %c0_50], %170 {strides = array<i32>} : memref<8x8x128xf32, #tpu.memory_space<vmem>>, vector<1x8x128xf32>,
    %c5 = arith.constant 5 : index
    %c0_51 = arith.constant 0 : index
    %c0_52 = arith.constant 0 : index
    %171 = vector.load %arg2[%c5, %c0_51, %c0_52] : memref<8x8x512xf32, #tpu.memory_space<vmem>>, vector<1x8x512xf32>
    %172 = vector.shape_cast %171 : vector<1x8x512xf32> to vector<8x512xf32>
    %173 = arith.truncf %167 : vector<8x128xf32> to vector<8x128xbf16>
    %cst_53 = arith.constant dense<0.000000e+00> : vector<8x512xf32>
    %174 = tpu.matmul %173, %3, %cst_53 {dimension_numbers = #tpu.dot_dimension_numbers<[1], [0], [0], [1], [0, 0, 1, 1], [], []>} : vector<8x128xbf16>, vector<128x512xbf16>, vector<8x512xf32> -> vector<8x512xf32>
    %175 = arith.addf %172, %174 : vector<8x512xf32>
    %176 = vector.extract_strided_slice %175 {offsets = [0, 0], sizes = [8, 128], strides = [1, 1]} : vector<8x512xf32> to vector<8x128xf32>
    %177 = arith.negf %176 : vector<8x128xf32>
    %178 = math.exp %177 : vector<8x128xf32>
    %cst_54 = arith.constant 1.000000e+00 : f32
    %179 = vector.broadcast %cst_54 : f32 to vector<8x128xf32>
    %180 = arith.addf %179, %178 : vector<8x128xf32>
    %181 = arith.divf %179, %180 : vector<8x128xf32>
    %182 = vector.extract_strided_slice %175 {offsets = [0, 128], sizes = [8, 128], strides = [1, 1]} : vector<8x512xf32> to vector<8x128xf32>
    %183 = arith.negf %182 : vector<8x128xf32>
    %184 = math.exp %183 : vector<8x128xf32>
    %cst_55 = arith.constant 1.000000e+00 : f32
    %185 = vector.broadcast %cst_55 : f32 to vector<8x128xf32>
    %186 = arith.addf %185, %184 : vector<8x128xf32>
    %187 = arith.divf %185, %186 : vector<8x128xf32>
    %188 = vector.extract_strided_slice %175 {offsets = [0, 256], sizes = [8, 128], strides = [1, 1]} : vector<8x512xf32> to vector<8x128xf32>
    %189 = math.tanh %188 : vector<8x128xf32>
    %190 = vector.extract_strided_slice %175 {offsets = [0, 384], sizes = [8, 128], strides = [1, 1]} : vector<8x512xf32> to vector<8x128xf32>
    %191 = arith.negf %190 : vector<8x128xf32>
    %192 = math.exp %191 : vector<8x128xf32>
    %cst_56 = arith.constant 1.000000e+00 : f32
    %193 = vector.broadcast %cst_56 : f32 to vector<8x128xf32>
    %194 = arith.addf %193, %192 : vector<8x128xf32>
    %195 = arith.divf %193, %194 : vector<8x128xf32>
    %196 = arith.mulf %187, %165 : vector<8x128xf32>
    %197 = arith.mulf %181, %189 : vector<8x128xf32>
    %198 = arith.addf %196, %197 : vector<8x128xf32>
    %199 = math.tanh %198 : vector<8x128xf32>
    %200 = arith.mulf %195, %199 : vector<8x128xf32>
    %c5_57 = arith.constant 5 : index
    %c0_58 = arith.constant 0 : index
    %c0_59 = arith.constant 0 : index
    %201 = vector.load %arg4[%c5_57, %c0_58, %c0_59] : memref<8x8x128xf32, #tpu.memory_space<vmem>>, vector<1x8x128xf32>
    %202 = vector.shape_cast %201 : vector<1x8x128xf32> to vector<8x128xf32>
    %203 = vector.shape_cast %200 : vector<8x128xf32> to vector<1x8x128xf32>
    tpu.vector_store %arg4[%c5_57, %c0_58, %c0_59], %203 {strides = array<i32>} : memref<8x8x128xf32, #tpu.memory_space<vmem>>, vector<1x8x128xf32>,
    %c6 = arith.constant 6 : index
    %c0_60 = arith.constant 0 : index
    %c0_61 = arith.constant 0 : index
    %204 = vector.load %arg2[%c6, %c0_60, %c0_61] : memref<8x8x512xf32, #tpu.memory_space<vmem>>, vector<1x8x512xf32>
    %205 = vector.shape_cast %204 : vector<1x8x512xf32> to vector<8x512xf32>
    %206 = arith.truncf %200 : vector<8x128xf32> to vector<8x128xbf16>
    %cst_62 = arith.constant dense<0.000000e+00> : vector<8x512xf32>
    %207 = tpu.matmul %206, %3, %cst_62 {dimension_numbers = #tpu.dot_dimension_numbers<[1], [0], [0], [1], [0, 0, 1, 1], [], []>} : vector<8x128xbf16>, vector<128x512xbf16>, vector<8x512xf32> -> vector<8x512xf32>
    %208 = arith.addf %205, %207 : vector<8x512xf32>
    %209 = vector.extract_strided_slice %208 {offsets = [0, 0], sizes = [8, 128], strides = [1, 1]} : vector<8x512xf32> to vector<8x128xf32>
    %210 = arith.negf %209 : vector<8x128xf32>
    %211 = math.exp %210 : vector<8x128xf32>
    %cst_63 = arith.constant 1.000000e+00 : f32
    %212 = vector.broadcast %cst_63 : f32 to vector<8x128xf32>
    %213 = arith.addf %212, %211 : vector<8x128xf32>
    %214 = arith.divf %212, %213 : vector<8x128xf32>
    %215 = vector.extract_strided_slice %208 {offsets = [0, 128], sizes = [8, 128], strides = [1, 1]} : vector<8x512xf32> to vector<8x128xf32>
    %216 = arith.negf %215 : vector<8x128xf32>
    %217 = math.exp %216 : vector<8x128xf32>
    %cst_64 = arith.constant 1.000000e+00 : f32
    %218 = vector.broadcast %cst_64 : f32 to vector<8x128xf32>
    %219 = arith.addf %218, %217 : vector<8x128xf32>
    %220 = arith.divf %218, %219 : vector<8x128xf32>
    %221 = vector.extract_strided_slice %208 {offsets = [0, 256], sizes = [8, 128], strides = [1, 1]} : vector<8x512xf32> to vector<8x128xf32>
    %222 = math.tanh %221 : vector<8x128xf32>
    %223 = vector.extract_strided_slice %208 {offsets = [0, 384], sizes = [8, 128], strides = [1, 1]} : vector<8x512xf32> to vector<8x128xf32>
    %224 = arith.negf %223 : vector<8x128xf32>
    %225 = math.exp %224 : vector<8x128xf32>
    %cst_65 = arith.constant 1.000000e+00 : f32
    %226 = vector.broadcast %cst_65 : f32 to vector<8x128xf32>
    %227 = arith.addf %226, %225 : vector<8x128xf32>
    %228 = arith.divf %226, %227 : vector<8x128xf32>
    %229 = arith.mulf %220, %198 : vector<8x128xf32>
    %230 = arith.mulf %214, %222 : vector<8x128xf32>
    %231 = arith.addf %229, %230 : vector<8x128xf32>
    %232 = math.tanh %231 : vector<8x128xf32>
    %233 = arith.mulf %228, %232 : vector<8x128xf32>
    %c6_66 = arith.constant 6 : index
    %c0_67 = arith.constant 0 : index
    %c0_68 = arith.constant 0 : index
    %234 = vector.load %arg4[%c6_66, %c0_67, %c0_68] : memref<8x8x128xf32, #tpu.memory_space<vmem>>, vector<1x8x128xf32>
    %235 = vector.shape_cast %234 : vector<1x8x128xf32> to vector<8x128xf32>
    %236 = vector.shape_cast %233 : vector<8x128xf32> to vector<1x8x128xf32>
    tpu.vector_store %arg4[%c6_66, %c0_67, %c0_68], %236 {strides = array<i32>} : memref<8x8x128xf32, #tpu.memory_space<vmem>>, vector<1x8x128xf32>,
    %c7 = arith.constant 7 : index
    %c0_69 = arith.constant 0 : index
    %c0_70 = arith.constant 0 : index
    %237 = vector.load %arg2[%c7, %c0_69, %c0_70] : memref<8x8x512xf32, #tpu.memory_space<vmem>>, vector<1x8x512xf32>
    %238 = vector.shape_cast %237 : vector<1x8x512xf32> to vector<8x512xf32>
    %239 = arith.truncf %233 : vector<8x128xf32> to vector<8x128xbf16>
    %cst_71 = arith.constant dense<0.000000e+00> : vector<8x512xf32>
    %240 = tpu.matmul %239, %3, %cst_71 {dimension_numbers = #tpu.dot_dimension_numbers<[1], [0], [0], [1], [0, 0, 1, 1], [], []>} : vector<8x128xbf16>, vector<128x512xbf16>, vector<8x512xf32> -> vector<8x512xf32>
    %241 = arith.addf %238, %240 : vector<8x512xf32>
    %242 = vector.extract_strided_slice %241 {offsets = [0, 0], sizes = [8, 128], strides = [1, 1]} : vector<8x512xf32> to vector<8x128xf32>
    %243 = arith.negf %242 : vector<8x128xf32>
    %244 = math.exp %243 : vector<8x128xf32>
    %cst_72 = arith.constant 1.000000e+00 : f32
    %245 = vector.broadcast %cst_72 : f32 to vector<8x128xf32>
    %246 = arith.addf %245, %244 : vector<8x128xf32>
    %247 = arith.divf %245, %246 : vector<8x128xf32>
    %248 = vector.extract_strided_slice %241 {offsets = [0, 128], sizes = [8, 128], strides = [1, 1]} : vector<8x512xf32> to vector<8x128xf32>
    %249 = arith.negf %248 : vector<8x128xf32>
    %250 = math.exp %249 : vector<8x128xf32>
    %cst_73 = arith.constant 1.000000e+00 : f32
    %251 = vector.broadcast %cst_73 : f32 to vector<8x128xf32>
    %252 = arith.addf %251, %250 : vector<8x128xf32>
    %253 = arith.divf %251, %252 : vector<8x128xf32>
    %254 = vector.extract_strided_slice %241 {offsets = [0, 256], sizes = [8, 128], strides = [1, 1]} : vector<8x512xf32> to vector<8x128xf32>
    %255 = math.tanh %254 : vector<8x128xf32>
    %256 = vector.extract_strided_slice %241 {offsets = [0, 384], sizes = [8, 128], strides = [1, 1]} : vector<8x512xf32> to vector<8x128xf32>
    %257 = arith.negf %256 : vector<8x128xf32>
    %258 = math.exp %257 : vector<8x128xf32>
    %cst_74 = arith.constant 1.000000e+00 : f32
    %259 = vector.broadcast %cst_74 : f32 to vector<8x128xf32>
    %260 = arith.addf %259, %258 : vector<8x128xf32>
    %261 = arith.divf %259, %260 : vector<8x128xf32>
    %262 = arith.mulf %253, %231 : vector<8x128xf32>
    %263 = arith.mulf %247, %255 : vector<8x128xf32>
    %264 = arith.addf %262, %263 : vector<8x128xf32>
    %265 = math.tanh %264 : vector<8x128xf32>
    %266 = arith.mulf %261, %265 : vector<8x128xf32>
    %c7_75 = arith.constant 7 : index
    %c0_76 = arith.constant 0 : index
    %c0_77 = arith.constant 0 : index
    %267 = vector.load %arg4[%c7_75, %c0_76, %c0_77] : memref<8x8x128xf32, #tpu.memory_space<vmem>>, vector<1x8x128xf32>
    %268 = vector.shape_cast %267 : vector<1x8x128xf32> to vector<8x128xf32>
    %269 = vector.shape_cast %266 : vector<8x128xf32> to vector<1x8x128xf32>
    tpu.vector_store %arg4[%c7_75, %c0_76, %c0_77], %269 {strides = array<i32>} : memref<8x8x128xf32, #tpu.memory_space<vmem>>, vector<1x8x128xf32>,
    %c0_78 = arith.constant 0 : index
    %c0_79 = arith.constant 0 : index
    %270 = vector.load %arg5[%c0_78, %c0_79] : memref<8x128xf32, #tpu.memory_space<vmem>>, vector<8x128xf32>
    tpu.vector_store %arg5[%c0_78, %c0_79], %266 {strides = array<i32>} : memref<8x128xf32, #tpu.memory_space<vmem>>, vector<8x128xf32>,
    %c0_80 = arith.constant 0 : index
    %c0_81 = arith.constant 0 : index
    %271 = vector.load %arg6[%c0_80, %c0_81] : memref<8x128xf32, #tpu.memory_space<vmem>>, vector<8x128xf32>
    tpu.vector_store %arg6[%c0_80, %c0_81], %264 {strides = array<i32>} : memref<8x128xf32, #tpu.memory_space<vmem>>, vector<8x128xf32>,
    return
  }
  func.func @transform_0(%arg0: i32, %arg1: i32) -> (i32, i32, i32) {
    %c0_i32 = arith.constant 0 : i32
    %c0_i32_0 = arith.constant 0 : i32
    return %arg1, %arg0, %c0_i32 : i32, i32, i32
  }
  func.func @transform_1(%arg0: i32, %arg1: i32) -> (i32, i32) {
    %c0_i32 = arith.constant 0 : i32
    %c0_i32_0 = arith.constant 0 : i32
    %c0_i32_1 = arith.constant 0 : i32
    return %c0_i32, %c0_i32_0 : i32, i32
  }
  func.func @transform_2(%arg0: i32, %arg1: i32) -> (i32, i32, i32) {
    %c0_i32 = arith.constant 0 : i32
    %c0_i32_0 = arith.constant 0 : i32
    return %arg1, %arg0, %c0_i32 : i32, i32, i32
  }
}

</mosaic_0001>

<llo_original>
// kernel: tpu_custom_call.1
$region0: #{tpu_custom_call.1}
  #allocation0 [shape = 'u32[]', space=smem, size = 0x4, offset = 0x4, fixed_abs, tag = 'smem constant byte address 0x4 - core index']
  #allocation1 [shape = 'u32[144,128]{1,0:T(1,128)}', space=vmem, size = 0x12000, scoped, tag = 'internal scratch']
  #allocation2 [shape = 'f32[8,128]{1,0:T(8,128)}', space=vmem, size = 0x1000, scoped, tag = 'scratch operand']
  #allocation3 [shape = 'f32[8,128]{1,0:T(8,128)}', space=vmem, size = 0x1000, scoped, tag = 'scratch operand']
  %s0 = inlined_call_operand.hbm [shape: f32[8,8,512], index: 0, kind: input, shape index: {}]
  %s1 = inlined_call_operand.hbm [shape: bf16[128,512], index: 1, kind: input, shape index: {}]
  %s2 = inlined_call_operand.hbm [shape: f32[8,8,128], index: 2, kind: output, shape index: {}]
  %s3 = sld [smem:[#allocation0]]
  $region30: #{tpu_custom_call.1} parent=0
    _
  %s5 = ssub.s32 1, %s3
  %s6 = scalar_select 0, %s5, %s3
  $region1: #{tpu_custom_call.1} parent=0
    #allocation4 [shape = 'u8[131072]{0}', space=vmem, size = 0x20000, scoped, tag = 'input window, operand 0, single buffered']
    #allocation5 [shape = 's32[1]{0}', space=sflag, size = 0x4, scoped, tag = 'scoped memory for tpu_custom_call.1']
    #allocation6 [shape = 's32[1]{0}', space=sflag, size = 0x4, scoped, tag = 'scoped memory for tpu_custom_call.1']
    #allocation7 [shape = 'u8[131072]{0}', space=vmem, size = 0x20000, scoped, tag = 'input window, operand 1, single buffered']
    #allocation8 [shape = 's32[1]{0}', space=sflag, size = 0x4, scoped, tag = 'scoped memory for tpu_custom_call.1']
    #allocation9 [shape = 'u8[32768]{0}', space=vmem, size = 0x8000, scoped, tag = 'output window, operand 0, single buffered']
    %7 = vsyncpa [#allocation5], 0
    %8 = vsyncpa [#allocation8], 0
    %9 = vsyncpa [#allocation6], 0
    // Predicated region
    $region2: #{tpu_custom_call.1} parent=1 // pred_check
      _
    $region3: #{tpu_custom_call.1} parent=1 // pred_check_branch
      %11 = sbr.rel (0) target = $region5
    $region4: #{tpu_custom_call.1} parent=1 // pred_region
      %s13 = ssub.s32 4096, 4096
      %14 = vsyncadd [#allocation5], %s13
      %s15 = sshll.u32 [#allocation4], 4
      %s16 = int_to_ptr.vmem [resolvable:$true] %s15
      %21 = dma.hbm_to_vmem [thread:$0]  %s0, 4096, %s16, [#allocation5], 512, 512, 32
    $region5: #{tpu_custom_call.1} parent=1 // pred_fallthru
      _
    // Predicated region
    $region6: #{tpu_custom_call.1} parent=1 // pred_check
      _
    $region7: #{tpu_custom_call.1} parent=1 // pred_check_branch
      %23 = sbr.rel (0) target = $region9
    $region8: #{tpu_custom_call.1} parent=1 // pred_region
      %s25 = ssub.s32 4096, 4096
      %26 = vsyncadd [#allocation8], %s25
      %s27 = sshll.u32 [#allocation7], 4
      %s28 = int_to_ptr.vmem [resolvable:$true] %s27
      %33 = dma.hbm_to_vmem [thread:$0]  %s1, 4096, %s28, [#allocation8], 256, 256, 16
    $region9: #{tpu_custom_call.1} parent=1 // pred_fallthru
      _
    // Predicated region
    $region10: #{tpu_custom_call.1} parent=1 // pred_check
      _
    $region11: #{tpu_custom_call.1} parent=1 // pred_check_branch
      %35 = sbr.rel (0) target = $region13
    $region12: #{tpu_custom_call.1} parent=1 // pred_region
      %36 = dma.done [#allocation5], 4096
    $region13: #{tpu_custom_call.1} parent=1 // pred_fallthru
      _
    // Predicated region
    $region14: #{tpu_custom_call.1} parent=1 // pred_check
      _
    $region15: #{tpu_custom_call.1} parent=1 // pred_check_branch
      %38 = sbr.rel (0) target = $region17
    $region16: #{tpu_custom_call.1} parent=1 // pred_region
      %39 = dma.done [#allocation8], 4096
    $region17: #{tpu_custom_call.1} parent=1 // pred_fallthru
      _
    %p41 = scmp.eq.s32.totalorder 0, 0
    // Predicated region
    $region18: #{tpu_custom_call.1} parent=1 // pred_check
      %p42 = pneg %p41
    $region19: #{tpu_custom_call.1} parent=1 // pred_check_branch
      %44 = sbr.rel (%p42) target = $region21
    $region20: #{tpu_custom_call.1} parent=1 // pred_region
      %45 = vst [vmem:[#allocation2] sm:$0xff] 0.0
      %46 = vst [vmem:[#allocation3] sm:$0xff] 0.0
    $region21: #{tpu_custom_call.1} parent=1 // pred_fallthru
      _
    %v47 = vld [vmem:[#allocation7] sm:$0xff]
    %v48 = vld [vmem:[#allocation7 + $0x8] sm:$0xff]
    %v49 = vld [vmem:[#allocation7 + $0x10] sm:$0xff]
    %v50 = vld [vmem:[#allocation7 + $0x18] sm:$0xff]
    %v51 = vld [vmem:[#allocation7 + $0x20] sm:$0xff]
    %v52 = vld [vmem:[#allocation7 + $0x28] sm:$0xff]
    %v53 = vld [vmem:[#allocation7 + $0x30] sm:$0xff]
    %v54 = vld [vmem:[#allocation7 + $0x38] sm:$0xff]
    %v55 = vld [vmem:[#allocation7 + $0x40] sm:$0xff]
    %v56 = vld [vmem:[#allocation7 + $0x48] sm:$0xff]
    %v57 = vld [vmem:[#allocation7 + $0x50] sm:$0xff]
    %v58 = vld [vmem:[#allocation7 + $0x58] sm:$0xff]
    %v59 = vld [vmem:[#allocation7 + $0x60] sm:$0xff]
    %v60 = vld [vmem:[#allocation7 + $0x68] sm:$0xff]
    %v61 = vld [vmem:[#allocation7 + $0x70] sm:$0xff]
    %v62 = vld [vmem:[#allocation7 + $0x78] sm:$0xff]
    %v63 = vld [vmem:[#allocation7 + $0x80] sm:$0xff]
    %v64 = vld [vmem:[#allocation7 + $0x88] sm:$0xff]
    %v65 = vld [vmem:[#allocation7 + $0x90] sm:$0xff]
    %v66 = vld [vmem:[#allocation7 + $0x98] sm:$0xff]
    %v67 = vld [vmem:[#allocation7 + $0xa0] sm:$0xff]
    %v68 = vld [vmem:[#allocation7 + $0xa8] sm:$0xff]
    %v69 = vld [vmem:[#allocation7 + $0xb0] sm:$0xff]
    %v70 = vld [vmem:[#allocation7 + $0xb8] sm:$0xff]
    %v71 = vld [vmem:[#allocation7 + $0xc0] sm:$0xff]
    %v72 = vld [vmem:[#allocation7 + $0xc8] sm:$0xff]
    %v73 = vld [vmem:[#allocation7 + $0xd0] sm:$0xff]
    %v74 = vld [vmem:[#allocation7 + $0xd8] sm:$0xff]
    %v75 = vld [vmem:[#allocation7 + $0xe0] sm:$0xff]
    %v76 = vld [vmem:[#allocation7 + $0xe8] sm:$0xff]
    %v77 = vld [vmem:[#allocation7 + $0xf0] sm:$0xff]
    %v78 = vld [vmem:[#allocation7 + $0xf8] sm:$0xff]
    %v79 = vld [vmem:[#allocation2] sm:$0xff]
    %v80 = vld [vmem:[#allocation3] sm:$0xff]
    %v81 = vld [vmem:[#allocation4] sm:$0xff]
    %v82 = vld [vmem:[#allocation4 + $0x8] sm:$0xff]
    %v83 = vld [vmem:[#allocation4 + $0x10] sm:$0xff]
    %v84 = vld [vmem:[#allocation4 + $0x18] sm:$0xff]
    %v85 = vpack.c.bf16 %v79, %v79
    %v118 = vunpack.c.l.b16 %v47
    %v119 = vunpack.c.h.b16 %v47
    %v120 = vunpack.c.l.b16 %v48
    %v121 = vunpack.c.h.b16 %v48
    %v122 = vunpack.c.l.b16 %v49
    %v123 = vunpack.c.h.b16 %v49
    %v124 = vunpack.c.l.b16 %v50
    %v125 = vunpack.c.h.b16 %v50
    %v126 = vunpack.c.l.b16 %v51
    %v127 = vunpack.c.h.b16 %v51
    %v128 = vunpack.c.l.b16 %v52
    %v129 = vunpack.c.h.b16 %v52
    %v130 = vunpack.c.l.b16 %v53
    %v131 = vunpack.c.h.b16 %v53
    %v132 = vunpack.c.l.b16 %v54
    %v133 = vunpack.c.h.b16 %v54
    %v134 = vunpack.c.l.b16 %v55
    %v135 = vunpack.c.h.b16 %v55
    %v136 = vunpack.c.l.b16 %v56
    %v137 = vunpack.c.h.b16 %v56
    %v138 = vunpack.c.l.b16 %v57
    %v139 = vunpack.c.h.b16 %v57
    %v140 = vunpack.c.l.b16 %v58
    %v141 = vunpack.c.h.b16 %v58
    %v142 = vunpack.c.l.b16 %v59
    %v143 = vunpack.c.h.b16 %v59
    %v144 = vunpack.c.l.b16 %v60
    %v145 = vunpack.c.h.b16 %v60
    %v146 = vunpack.c.l.b16 %v61
    %v147 = vunpack.c.h.b16 %v61
    %v148 = vunpack.c.l.b16 %v62
    %v149 = vunpack.c.h.b16 %v62
    %v150 = vunpack.c.l.b16 %v63
    %v151 = vunpack.c.h.b16 %v63
    %v152 = vunpack.c.l.b16 %v64
    %v153 = vunpack.c.h.b16 %v64
    %v154 = vunpack.c.l.b16 %v65
    %v155 = vunpack.c.h.b16 %v65
    %v156 = vunpack.c.l.b16 %v66
    %v157 = vunpack.c.h.b16 %v66
    %v158 = vunpack.c.l.b16 %v67
    %v159 = vunpack.c.h.b16 %v67
    %v160 = vunpack.c.l.b16 %v68
    %v161 = vunpack.c.h.b16 %v68
    %v162 = vunpack.c.l.b16 %v69
    %v163 = vunpack.c.h.b16 %v69
    %v164 = vunpack.c.l.b16 %v70
    %v165 = vunpack.c.h.b16 %v70
    %v166 = vunpack.c.l.b16 %v71
    %v167 = vunpack.c.h.b16 %v71
    %v168 = vunpack.c.l.b16 %v72
    %v169 = vunpack.c.h.b16 %v72
    %v170 = vunpack.c.l.b16 %v73
    %v171 = vunpack.c.h.b16 %v73
    %v172 = vunpack.c.l.b16 %v74
    %v173 = vunpack.c.h.b16 %v74
    %v174 = vunpack.c.l.b16 %v75
    %v175 = vunpack.c.h.b16 %v75
    %v176 = vunpack.c.l.b16 %v76
    %v177 = vunpack.c.h.b16 %v76
    %v178 = vunpack.c.l.b16 %v77
    %v179 = vunpack.c.h.b16 %v77
    %v180 = vunpack.c.l.b16 %v78
    %v181 = vunpack.c.h.b16 %v78
    %v182 = vpack.c.b16 %v122, %v118
    %v183 = vpack.c.b16 %v123, %v119
    %v184 = vpack.c.b16 %v124, %v120
    %v185 = vpack.c.b16 %v125, %v121
    %v186 = vpack.c.b16 %v130, %v126
    %v187 = vpack.c.b16 %v131, %v127
    %v188 = vpack.c.b16 %v132, %v128
    %v189 = vpack.c.b16 %v133, %v129
    %v190 = vpack.c.b16 %v138, %v134
    %v191 = vpack.c.b16 %v139, %v135
    %v192 = vpack.c.b16 %v140, %v136
    %v193 = vpack.c.b16 %v141, %v137
    %v194 = vpack.c.b16 %v146, %v142
    %v195 = vpack.c.b16 %v147, %v143
    %v196 = vpack.c.b16 %v148, %v144
    %v197 = vpack.c.b16 %v149, %v145
    %v198 = vpack.c.b16 %v154, %v150
    %v199 = vpack.c.b16 %v155, %v151
    %v200 = vpack.c.b16 %v156, %v152
    %v201 = vpack.c.b16 %v157, %v153
    %v202 = vpack.c.b16 %v162, %v158
    %v203 = vpack.c.b16 %v163, %v159
    %v204 = vpack.c.b16 %v164, %v160
    %v205 = vpack.c.b16 %v165, %v161
    %v206 = vpack.c.b16 %v170, %v166
    %v207 = vpack.c.b16 %v171, %v167
    %v208 = vpack.c.b16 %v172, %v168
    %v209 = vpack.c.b16 %v173, %v169
    %v210 = vpack.c.b16 %v178, %v174
    %v211 = vpack.c.b16 %v179, %v175
    %v212 = vpack.c.b16 %v180, %v176
    %v213 = vpack.c.b16 %v181, %v177
    %246 = vmatprep.subr.bf16.mxu0 %v183
    %247 = vmatpush1.bf16.msra.mxu0 %v182
    %248 = vmatprep.subr.bf16.mxu0 %v187
    %249 = vmatpush1.bf16.msra.mxu0 %v186
    %250 = vmatprep.subr.bf16.mxu0 %v191
    %251 = vmatpush1.bf16.msra.mxu0 %v190
    %252 = vmatprep.subr.bf16.mxu0 %v195
    %253 = vmatpush1.bf16.msra.mxu0 %v194
    %254 = vmatprep.subr.bf16.mxu0 %v199
    %255 = vmatpush1.bf16.msra.mxu0 %v198
    %256 = vmatprep.subr.bf16.mxu0 %v203
    %257 = vmatpush1.bf16.msra.mxu0 %v202
    %258 = vmatprep.subr.bf16.mxu0 %v207
    %259 = vmatpush1.bf16.msra.mxu0 %v206
    %260 = vmatprep.subr.bf16.mxu0 %v211
    %261 = vmatpush1.bf16.msra.mxu0 %v210
    %262 = vmatprep.subr.bf16.mxu0 0
    %263 = vmatpush1.bf16.msra.mxu0 0
    %264 = vmatprep.subr.bf16.mxu0 0
    %265 = vmatpush1.bf16.msra.mxu0 0
    %266 = vmatprep.subr.bf16.mxu0 0
    %267 = vmatpush1.bf16.msra.mxu0 0
    %268 = vmatprep.subr.bf16.mxu0 0
    %269 = vmatpush1.bf16.msra.mxu0 0
    %270 = vmatprep.subr.bf16.mxu0 0
    %271 = vmatpush1.bf16.msra.mxu0 0
    %272 = vmatprep.subr.bf16.mxu0 0
    %273 = vmatpush1.bf16.msra.mxu0 0
    %274 = vmatprep.subr.bf16.mxu0 0
    %275 = vmatpush1.bf16.msra.mxu0 0
    %276 = vmatprep.subr.bf16.mxu0 0
    %277 = vmatpush1.bf16.msra.mxu0 0
    %278 = vmatprep.mubr.bf16.mxu0 0
    %279 = vmatmul.mubr.bf16.gmra.mrb[0].mxu0 %v85
    %v280 = vpop.f32.mrb[0].mxu0
    %v281 = vadd.f32 0.0, %v280
    %v282 = vpop.f32.mrb[0].mxu0
    %v283 = vadd.f32 0.0, %v282
    %v284 = vpop.f32.mrb[0].mxu0
    %v285 = vpop.f32.mrb[0].mxu0
    %286 = vdwg.mxu0
    %287 = vmatprep.subr.bf16.mxu0 %v185
    %288 = vmatpush1.bf16.msra.mxu0 %v184
    %289 = vmatprep.subr.bf16.mxu0 %v189
    %290 = vmatpush1.bf16.msra.mxu0 %v188
    %291 = vmatprep.subr.bf16.mxu0 %v193
    %292 = vmatpush1.bf16.msra.mxu0 %v192
    %293 = vmatprep.subr.bf16.mxu0 %v197
    %294 = vmatpush1.bf16.msra.mxu0 %v196
    %295 = vmatprep.subr.bf16.mxu0 %v201
    %296 = vmatpush1.bf16.msra.mxu0 %v200
    %297 = vmatprep.subr.bf16.mxu0 %v205
    %298 = vmatpush1.bf16.msra.mxu0 %v204
    %299 = vmatprep.subr.bf16.mxu0 %v209
    %300 = vmatpush1.bf16.msra.mxu0 %v208
    %301 = vmatprep.subr.bf16.mxu0 %v213
    %302 = vmatpush1.bf16.msra.mxu0 %v212
    %303 = vmatprep.subr.bf16.mxu0 0
    %304 = vmatpush1.bf16.msra.mxu0 0
    %305 = vmatprep.subr.bf16.mxu0 0
    %306 = vmatpush1.bf16.msra.mxu0 0
    %307 = vmatprep.subr.bf16.mxu0 0
    %308 = vmatpush1.bf16.msra.mxu0 0
    %309 = vmatprep.subr.bf16.mxu0 0
    %310 = vmatpush1.bf16.msra.mxu0 0
    %311 = vmatprep.subr.bf16.mxu0 0
    %312 = vmatpush1.bf16.msra.mxu0 0
    %313 = vmatprep.subr.bf16.mxu0 0
    %314 = vmatpush1.bf16.msra.mxu0 0
    %315 = vmatprep.subr.bf16.mxu0 0
    %316 = vmatpush1.bf16.msra.mxu0 0
    %317 = vmatprep.subr.bf16.mxu0 0
    %318 = vmatpush1.bf16.msra.mxu0 0
    %319 = vmatprep.mubr.bf16.mxu0 0
    %320 = vmatmul.mubr.bf16.gmra.mrb[0].mxu0 %v85
    %v321 = vpop.f32.mrb[0].mxu0
    %v322 = vadd.f32 0.0, %v321
    %v323 = vpop.f32.mrb[0].mxu0
    %v324 = vadd.f32 0.0, %v323
    %v325 = vpop.f32.mrb[0].mxu0
    %v326 = vpop.f32.mrb[0].mxu0
    %327 = vdwg.mxu0
    %v328 = vadd.f32 %v81, %v281
    %v329 = vadd.f32 %v82, %v283
    %v330 = vadd.f32 %v83, %v322
    %v331 = vadd.f32 %v84, %v324
    %v332 = vxor.u32 %v328, 2147483648
    %v333 = vmul.f32 %v332, 1.442695
    %v334 = vpow.pop %v333
    %v335 = vadd.f32 %v334, 1.0
    %v336 = vrcp.pop %v335
    %v337 = vmul.f32 1.0, %v336
    %v338 = vxor.u32 %v329, 2147483648
    %v339 = vmul.f32 %v338, 1.442695
    %v340 = vpow.pop %v339
    %v341 = vadd.f32 %v340, 1.0
    %v342 = vrcp.pop %v341
    %v343 = vmul.f32 1.0, %v342
    %v344 = vtanh.pop %v330
    %v345 = vxor.u32 %v331, 2147483648
    %v346 = vmul.f32 %v345, 1.442695
    %v347 = vpow.pop %v346
    %v348 = vadd.f32 %v347, 1.0
    %v349 = vrcp.pop %v348
    %v350 = vmul.f32 1.0, %v349
    %v351 = vmul.f32 %v343, %v80
    %v352 = vmul.f32 %v337, %v344
    %v353 = vadd.f32 %v351, %v352
    %v354 = vtanh.pop %v353
    %v355 = vmul.f32 %v350, %v354
    %356 = vst [vmem:[#allocation9] sm:$0xff] %v355
    %s357 = scalar_lea.vmem [#allocation4], 32
    %v358 = vld [vmem:[%s357] sm:$0xff]
    %v359 = vld [vmem:[%s357 + $0x8] sm:$0xff]
    %v360 = vld [vmem:[%s357 + $0x10] sm:$0xff]
    %v361 = vld [vmem:[%s357 + $0x18] sm:$0xff]
    %v362 = vpack.c.bf16 %v355, %v355
    %363 = vmatprep.subr.bf16.mxu0 %v183
    %364 = vmatpush1.bf16.msra.mxu0 %v182
    %365 = vmatprep.subr.bf16.mxu0 %v187
    %366 = vmatpush1.bf16.msra.mxu0 %v186
    %367 = vmatprep.subr.bf16.mxu0 %v191
    %368 = vmatpush1.bf16.msra.mxu0 %v190
    %369 = vmatprep.subr.bf16.mxu0 %v195
    %370 = vmatpush1.bf16.msra.mxu0 %v194
    %371 = vmatprep.subr.bf16.mxu0 %v199
    %372 = vmatpush1.bf16.msra.mxu0 %v198
    %373 = vmatprep.subr.bf16.mxu0 %v203
    %374 = vmatpush1.bf16.msra.mxu0 %v202
    %375 = vmatprep.subr.bf16.mxu0 %v207
    %376 = vmatpush1.bf16.msra.mxu0 %v206
    %377 = vmatprep.subr.bf16.mxu0 %v211
    %378 = vmatpush1.bf16.msra.mxu0 %v210
    %379 = vmatprep.subr.bf16.mxu0 0
    %380 = vmatpush1.bf16.msra.mxu0 0
    %381 = vmatprep.subr.bf16.mxu0 0
    %382 = vmatpush1.bf16.msra.mxu0 0
    %383 = vmatprep.subr.bf16.mxu0 0
    %384 = vmatpush1.bf16.msra.mxu0 0
    %385 = vmatprep.subr.bf16.mxu0 0
    %386 = vmatpush1.bf16.msra.mxu0 0
    %387 = vmatprep.subr.bf16.mxu0 0
    %388 = vmatpush1.bf16.msra.mxu0 0
    %389 = vmatprep.subr.bf16.mxu0 0
    %390 = vmatpush1.bf16.msra.mxu0 0
    %391 = vmatprep.subr.bf16.mxu0 0
    %392 = vmatpush1.bf16.msra.mxu0 0
    %393 = vmatprep.subr.bf16.mxu0 0
    %394 = vmatpush1.bf16.msra.mxu0 0
    %395 = vmatprep.mubr.bf16.mxu0 0
    %396 = vmatmul.mubr.bf16.gmra.mrb[0].mxu0 %v362
    %v397 = vpop.f32.mrb[0].mxu0
    %v398 = vadd.f32 0.0, %v397
    %v399 = vpop.f32.mrb[0].mxu0
    %v400 = vadd.f32 0.0, %v399
    %v401 = vpop.f32.mrb[0].mxu0
    %v402 = vpop.f32.mrb[0].mxu0
    %403 = vdwg.mxu0
    %404 = vmatprep.subr.bf16.mxu0 %v185
    %405 = vmatpush1.bf16.msra.mxu0 %v184
    %406 = vmatprep.subr.bf16.mxu0 %v189
    %407 = vmatpush1.bf16.msra.mxu0 %v188
    %408 = vmatprep.subr.bf16.mxu0 %v193
    %409 = vmatpush1.bf16.msra.mxu0 %v192
    %410 = vmatprep.subr.bf16.mxu0 %v197
    %411 = vmatpush1.bf16.msra.mxu0 %v196
    %412 = vmatprep.subr.bf16.mxu0 %v201
    %413 = vmatpush1.bf16.msra.mxu0 %v200
    %414 = vmatprep.subr.bf16.mxu0 %v205
    %415 = vmatpush1.bf16.msra.mxu0 %v204
    %416 = vmatprep.subr.bf16.mxu0 %v209
    %417 = vmatpush1.bf16.msra.mxu0 %v208
    %418 = vmatprep.subr.bf16.mxu0 %v213
    %419 = vmatpush1.bf16.msra.mxu0 %v212
    %420 = vmatprep.subr.bf16.mxu0 0
    %421 = vmatpush1.bf16.msra.mxu0 0
    %422 = vmatprep.subr.bf16.mxu0 0
    %423 = vmatpush1.bf16.msra.mxu0 0
    %424 = vmatprep.subr.bf16.mxu0 0
    %425 = vmatpush1.bf16.msra.mxu0 0
    %426 = vmatprep.subr.bf16.mxu0 0
    %427 = vmatpush1.bf16.msra.mxu0 0
    %428 = vmatprep.subr.bf16.mxu0 0
    %429 = vmatpush1.bf16.msra.mxu0 0
    %430 = vmatprep.subr.bf16.mxu0 0
    %431 = vmatpush1.bf16.msra.mxu0 0
    %432 = vmatprep.subr.bf16.mxu0 0
    %433 = vmatpush1.bf16.msra.mxu0 0
    %434 = vmatprep.subr.bf16.mxu0 0
    %435 = vmatpush1.bf16.msra.mxu0 0
    %436 = vmatprep.mubr.bf16.mxu0 0
    %437 = vmatmul.mubr.bf16.gmra.mrb[0].mxu0 %v362
    %v438 = vpop.f32.mrb[0].mxu0
    %v439 = vadd.f32 0.0, %v438
    %v440 = vpop.f32.mrb[0].mxu0
    %v441 = vadd.f32 0.0, %v440
    %v442 = vpop.f32.mrb[0].mxu0
    %v443 = vpop.f32.mrb[0].mxu0
    %444 = vdwg.mxu0
    %v445 = vadd.f32 %v358, %v398
    %v446 = vadd.f32 %v359, %v400
    %v447 = vadd.f32 %v360, %v439
    %v448 = vadd.f32 %v361, %v441
    %v449 = vxor.u32 %v445, 2147483648
    %v450 = vmul.f32 %v449, 1.442695
    %v451 = vpow.pop %v450
    %v452 = vadd.f32 %v451, 1.0
    %v453 = vrcp.pop %v452
    %v454 = vmul.f32 1.0, %v453
    %v455 = vxor.u32 %v446, 2147483648
    %v456 = vmul.f32 %v455, 1.442695
    %v457 = vpow.pop %v456
    %v458 = vadd.f32 %v457, 1.0
    %v459 = vrcp.pop %v458
    %v460 = vmul.f32 1.0, %v459
    %v461 = vtanh.pop %v447
    %v462 = vxor.u32 %v448, 2147483648
    %v463 = vmul.f32 %v462, 1.442695
    %v464 = vpow.pop %v463
    %v465 = vadd.f32 %v464, 1.0
    %v466 = vrcp.pop %v465
    %v467 = vmul.f32 1.0, %v466
    %v468 = vmul.f32 %v460, %v353
    %v469 = vmul.f32 %v454, %v461
    %v470 = vadd.f32 %v468, %v469
    %v471 = vtanh.pop %v470
    %v472 = vmul.f32 %v467, %v471
    %s473 = scalar_lea.vmem [#allocation9], 8
    %474 = vst [vmem:[%s473] sm:$0xff] %v472
    %s475 = scalar_lea.vmem [#allocation4], 64
    %v476 = vld [vmem:[%s475] sm:$0xff]
    %v477 = vld [vmem:[%s475 + $0x8] sm:$0xff]
    %v478 = vld [vmem:[%s475 + $0x10] sm:$0xff]
    %v479 = vld [vmem:[%s475 + $0x18] sm:$0xff]
    %v480 = vpack.c.bf16 %v472, %v472
    %481 = vmatprep.subr.bf16.mxu0 %v183
    %482 = vmatpush1.bf16.msra.mxu0 %v182
    %483 = vmatprep.subr.bf16.mxu0 %v187
    %484 = vmatpush1.bf16.msra.mxu0 %v186
    %485 = vmatprep.subr.bf16.mxu0 %v191
    %486 = vmatpush1.bf16.msra.mxu0 %v190
    %487 = vmatprep.subr.bf16.mxu0 %v195
    %488 = vmatpush1.bf16.msra.mxu0 %v194
    %489 = vmatprep.subr.bf16.mxu0 %v199
    %490 = vmatpush1.bf16.msra.mxu0 %v198
    %491 = vmatprep.subr.bf16.mxu0 %v203
    %492 = vmatpush1.bf16.msra.mxu0 %v202
    %493 = vmatprep.subr.bf16.mxu0 %v207
    %494 = vmatpush1.bf16.msra.mxu0 %v206
    %495 = vmatprep.subr.bf16.mxu0 %v211
    %496 = vmatpush1.bf16.msra.mxu0 %v210
    %497 = vmatprep.subr.bf16.mxu0 0
    %498 = vmatpush1.bf16.msra.mxu0 0
    %499 = vmatprep.subr.bf16.mxu0 0
    %500 = vmatpush1.bf16.msra.mxu0 0
    %501 = vmatprep.subr.bf16.mxu0 0
    %502 = vmatpush1.bf16.msra.mxu0 0
    %503 = vmatprep.subr.bf16.mxu0 0
    %504 = vmatpush1.bf16.msra.mxu0 0
    %505 = vmatprep.subr.bf16.mxu0 0
    %506 = vmatpush1.bf16.msra.mxu0 0
    %507 = vmatprep.subr.bf16.mxu0 0
    %508 = vmatpush1.bf16.msra.mxu0 0
    %509 = vmatprep.subr.bf16.mxu0 0
    %510 = vmatpush1.bf16.msra.mxu0 0
    %511 = vmatprep.subr.bf16.mxu0 0
    %512 = vmatpush1.bf16.msra.mxu0 0
    %513 = vmatprep.mubr.bf16.mxu0 0
    %514 = vmatmul.mubr.bf16.gmra.mrb[0].mxu0 %v480
    %v515 = vpop.f32.mrb[0].mxu0
    %v516 = vadd.f32 0.0, %v515
    %v517 = vpop.f32.mrb[0].mxu0
    %v518 = vadd.f32 0.0, %v517
    %v519 = vpop.f32.mrb[0].mxu0
    %v520 = vpop.f32.mrb[0].mxu0
    %521 = vdwg.mxu0
    %522 = vmatprep.subr.bf16.mxu0 %v185
    %523 = vmatpush1.bf16.msra.mxu0 %v184
    %524 = vmatprep.subr.bf16.mxu0 %v189
    %525 = vmatpush1.bf16.msra.mxu0 %v188
    %526 = vmatprep.subr.bf16.mxu0 %v193
    %527 = vmatpush1.bf16.msra.mxu0 %v192
    %528 = vmatprep.subr.bf16.mxu0 %v197
    %529 = vmatpush1.bf16.msra.mxu0 %v196
    %530 = vmatprep.subr.bf16.mxu0 %v201
    %531 = vmatpush1.bf16.msra.mxu0 %v200
    %532 = vmatprep.subr.bf16.mxu0 %v205
    %533 = vmatpush1.bf16.msra.mxu0 %v204
    %534 = vmatprep.subr.bf16.mxu0 %v209
    %535 = vmatpush1.bf16.msra.mxu0 %v208
    %536 = vmatprep.subr.bf16.mxu0 %v213
    %537 = vmatpush1.bf16.msra.mxu0 %v212
    %538 = vmatprep.subr.bf16.mxu0 0
    %539 = vmatpush1.bf16.msra.mxu0 0
    %540 = vmatprep.subr.bf16.mxu0 0
    %541 = vmatpush1.bf16.msra.mxu0 0
    %542 = vmatprep.subr.bf16.mxu0 0
    %543 = vmatpush1.bf16.msra.mxu0 0
    %544 = vmatprep.subr.bf16.mxu0 0
    %545 = vmatpush1.bf16.msra.mxu0 0
    %546 = vmatprep.subr.bf16.mxu0 0
    %547 = vmatpush1.bf16.msra.mxu0 0
    %548 = vmatprep.subr.bf16.mxu0 0
    %549 = vmatpush1.bf16.msra.mxu0 0
    %550 = vmatprep.subr.bf16.mxu0 0
    %551 = vmatpush1.bf16.msra.mxu0 0
    %552 = vmatprep.subr.bf16.mxu0 0
    %553 = vmatpush1.bf16.msra.mxu0 0
    %554 = vmatprep.mubr.bf16.mxu0 0
    %555 = vmatmul.mubr.bf16.gmra.mrb[0].mxu0 %v480
    %v556 = vpop.f32.mrb[0].mxu0
    %v557 = vadd.f32 0.0, %v556
    %v558 = vpop.f32.mrb[0].mxu0
    %v559 = vadd.f32 0.0, %v558
    %v560 = vpop.f32.mrb[0].mxu0
    %v561 = vpop.f32.mrb[0].mxu0
    %562 = vdwg.mxu0
    %v563 = vadd.f32 %v476, %v516
    %v564 = vadd.f32 %v477, %v518
    %v565 = vadd.f32 %v478, %v557
    %v566 = vadd.f32 %v479, %v559
    %v567 = vxor.u32 %v563, 2147483648
    %v568 = vmul.f32 %v567, 1.442695
    %v569 = vpow.pop %v568
    %v570 = vadd.f32 %v569, 1.0
    %v571 = vrcp.pop %v570
    %v572 = vmul.f32 1.0, %v571
    %v573 = vxor.u32 %v564, 2147483648
    %v574 = vmul.f32 %v573, 1.442695
    %v575 = vpow.pop %v574
    %v576 = vadd.f32 %v575, 1.0
    %v577 = vrcp.pop %v576
    %v578 = vmul.f32 1.0, %v577
    %v579 = vtanh.pop %v565
    %v580 = vxor.u32 %v566, 2147483648
    %v581 = vmul.f32 %v580, 1.442695
    %v582 = vpow.pop %v581
    %v583 = vadd.f32 %v582, 1.0
    %v584 = vrcp.pop %v583
    %v585 = vmul.f32 1.0, %v584
    %v586 = vmul.f32 %v578, %v470
    %v587 = vmul.f32 %v572, %v579
    %v588 = vadd.f32 %v586, %v587
    %v589 = vtanh.pop %v588
    %v590 = vmul.f32 %v585, %v589
    %s591 = scalar_lea.vmem [#allocation9], 16
    %592 = vst [vmem:[%s591] sm:$0xff] %v590
    %s593 = scalar_lea.vmem [#allocation4], 96
    %v594 = vld [vmem:[%s593] sm:$0xff]
    %v595 = vld [vmem:[%s593 + $0x8] sm:$0xff]
    %v596 = vld [vmem:[%s593 + $0x10] sm:$0xff]
    %v597 = vld [vmem:[%s593 + $0x18] sm:$0xff]
    %v598 = vpack.c.bf16 %v590, %v590
    %599 = vmatprep.subr.bf16.mxu0 %v183
    %600 = vmatpush1.bf16.msra.mxu0 %v182
    %601 = vmatprep.subr.bf16.mxu0 %v187
    %602 = vmatpush1.bf16.msra.mxu0 %v186
    %603 = vmatprep.subr.bf16.mxu0 %v191
    %604 = vmatpush1.bf16.msra.mxu0 %v190
    %605 = vmatprep.subr.bf16.mxu0 %v195
    %606 = vmatpush1.bf16.msra.mxu0 %v194
    %607 = vmatprep.subr.bf16.mxu0 %v199
    %608 = vmatpush1.bf16.msra.mxu0 %v198
    %609 = vmatprep.subr.bf16.mxu0 %v203
    %610 = vmatpush1.bf16.msra.mxu0 %v202
    %611 = vmatprep.subr.bf16.mxu0 %v207
    %612 = vmatpush1.bf16.msra.mxu0 %v206
    %613 = vmatprep.subr.bf16.mxu0 %v211
    %614 = vmatpush1.bf16.msra.mxu0 %v210
    %615 = vmatprep.subr.bf16.mxu0 0
    %616 = vmatpush1.bf16.msra.mxu0 0
    %617 = vmatprep.subr.bf16.mxu0 0
    %618 = vmatpush1.bf16.msra.mxu0 0
    %619 = vmatprep.subr.bf16.mxu0 0
    %620 = vmatpush1.bf16.msra.mxu0 0
    %621 = vmatprep.subr.bf16.mxu0 0
    %622 = vmatpush1.bf16.msra.mxu0 0
    %623 = vmatprep.subr.bf16.mxu0 0
    %624 = vmatpush1.bf16.msra.mxu0 0
    %625 = vmatprep.subr.bf16.mxu0 0
    %626 = vmatpush1.bf16.msra.mxu0 0
    %627 = vmatprep.subr.bf16.mxu0 0
    %628 = vmatpush1.bf16.msra.mxu0 0
    %629 = vmatprep.subr.bf16.mxu0 0
    %630 = vmatpush1.bf16.msra.mxu0 0
    %631 = vmatprep.mubr.bf16.mxu0 0
    %632 = vmatmul.mubr.bf16.gmra.mrb[0].mxu0 %v598
    %v633 = vpop.f32.mrb[0].mxu0
    %v634 = vadd.f32 0.0, %v633
    %v635 = vpop.f32.mrb[0].mxu0
    %v636 = vadd.f32 0.0, %v635
    %v637 = vpop.f32.mrb[0].mxu0
    %v638 = vpop.f32.mrb[0].mxu0
    %639 = vdwg.mxu0
    %640 = vmatprep.subr.bf16.mxu0 %v185
    %641 = vmatpush1.bf16.msra.mxu0 %v184
    %642 = vmatprep.subr.bf16.mxu0 %v189
    %643 = vmatpush1.bf16.msra.mxu0 %v188
    %644 = vmatprep.subr.bf16.mxu0 %v193
    %645 = vmatpush1.bf16.msra.mxu0 %v192
    %646 = vmatprep.subr.bf16.mxu0 %v197
    %647 = vmatpush1.bf16.msra.mxu0 %v196
    %648 = vmatprep.subr.bf16.mxu0 %v201
    %649 = vmatpush1.bf16.msra.mxu0 %v200
    %650 = vmatprep.subr.bf16.mxu0 %v205
    %651 = vmatpush1.bf16.msra.mxu0 %v204
    %652 = vmatprep.subr.bf16.mxu0 %v209
    %653 = vmatpush1.bf16.msra.mxu0 %v208
    %654 = vmatprep.subr.bf16.mxu0 %v213
    %655 = vmatpush1.bf16.msra.mxu0 %v212
    %656 = vmatprep.subr.bf16.mxu0 0
    %657 = vmatpush1.bf16.msra.mxu0 0
    %658 = vmatprep.subr.bf16.mxu0 0
    %659 = vmatpush1.bf16.msra.mxu0 0
    %660 = vmatprep.subr.bf16.mxu0 0
    %661 = vmatpush1.bf16.msra.mxu0 0
    %662 = vmatprep.subr.bf16.mxu0 0
    %663 = vmatpush1.bf16.msra.mxu0 0
    %664 = vmatprep.subr.bf16.mxu0 0
    %665 = vmatpush1.bf16.msra.mxu0 0
    %666 = vmatprep.subr.bf16.mxu0 0
    %667 = vmatpush1.bf16.msra.mxu0 0
    %668 = vmatprep.subr.bf16.mxu0 0
    %669 = vmatpush1.bf16.msra.mxu0 0
    %670 = vmatprep.subr.bf16.mxu0 0
    %671 = vmatpush1.bf16.msra.mxu0 0
    %672 = vmatprep.mubr.bf16.mxu0 0
    %673 = vmatmul.mubr.bf16.gmra.mrb[0].mxu0 %v598
    %v674 = vpop.f32.mrb[0].mxu0
    %v675 = vadd.f32 0.0, %v674
    %v676 = vpop.f32.mrb[0].mxu0
    %v677 = vadd.f32 0.0, %v676
    %v678 = vpop.f32.mrb[0].mxu0
    %v679 = vpop.f32.mrb[0].mxu0
    %680 = vdwg.mxu0
    %v681 = vadd.f32 %v594, %v634
    %v682 = vadd.f32 %v595, %v636
    %v683 = vadd.f32 %v596, %v675
    %v684 = vadd.f32 %v597, %v677
    %v685 = vxor.u32 %v681, 2147483648
    %v686 = vmul.f32 %v685, 1.442695
    %v687 = vpow.pop %v686
    %v688 = vadd.f32 %v687, 1.0
    %v689 = vrcp.pop %v688
    %v690 = vmul.f32 1.0, %v689
    %v691 = vxor.u32 %v682, 2147483648
    %v692 = vmul.f32 %v691, 1.442695
    %v693 = vpow.pop %v692
    %v694 = vadd.f32 %v693, 1.0
    %v695 = vrcp.pop %v694
    %v696 = vmul.f32 1.0, %v695
    %v697 = vtanh.pop %v683
    %v698 = vxor.u32 %v684, 2147483648
    %v699 = vmul.f32 %v698, 1.442695
    %v700 = vpow.pop %v699
    %v701 = vadd.f32 %v700, 1.0
    %v702 = vrcp.pop %v701
    %v703 = vmul.f32 1.0, %v702
    %v704 = vmul.f32 %v696, %v588
    %v705 = vmul.f32 %v690, %v697
    %v706 = vadd.f32 %v704, %v705
    %v707 = vtanh.pop %v706
    %v708 = vmul.f32 %v703, %v707
    %s709 = scalar_lea.vmem [#allocation9], 24
    %710 = vst [vmem:[%s709] sm:$0xff] %v708
    %s711 = scalar_lea.vmem [#allocation4], 128
    %v712 = vld [vmem:[%s711] sm:$0xff]
    %v713 = vld [vmem:[%s711 + $0x8] sm:$0xff]
    %v714 = vld [vmem:[%s711 + $0x10] sm:$0xff]
    %v715 = vld [vmem:[%s711 + $0x18] sm:$0xff]
    %v716 = vpack.c.bf16 %v708, %v708
    %717 = vmatprep.subr.bf16.mxu0 %v183
    %718 = vmatpush1.bf16.msra.mxu0 %v182
    %719 = vmatprep.subr.bf16.mxu0 %v187
    %720 = vmatpush1.bf16.msra.mxu0 %v186
    %721 = vmatprep.subr.bf16.mxu0 %v191
    %722 = vmatpush1.bf16.msra.mxu0 %v190
    %723 = vmatprep.subr.bf16.mxu0 %v195
    %724 = vmatpush1.bf16.msra.mxu0 %v194
    %725 = vmatprep.subr.bf16.mxu0 %v199
    %726 = vmatpush1.bf16.msra.mxu0 %v198
    %727 = vmatprep.subr.bf16.mxu0 %v203
    %728 = vmatpush1.bf16.msra.mxu0 %v202
    %729 = vmatprep.subr.bf16.mxu0 %v207
    %730 = vmatpush1.bf16.msra.mxu0 %v206
    %731 = vmatprep.subr.bf16.mxu0 %v211
    %732 = vmatpush1.bf16.msra.mxu0 %v210
    %733 = vmatprep.subr.bf16.mxu0 0
    %734 = vmatpush1.bf16.msra.mxu0 0
    %735 = vmatprep.subr.bf16.mxu0 0
    %736 = vmatpush1.bf16.msra.mxu0 0
    %737 = vmatprep.subr.bf16.mxu0 0
    %738 = vmatpush1.bf16.msra.mxu0 0
    %739 = vmatprep.subr.bf16.mxu0 0
    %740 = vmatpush1.bf16.msra.mxu0 0
    %741 = vmatprep.subr.bf16.mxu0 0
    %742 = vmatpush1.bf16.msra.mxu0 0
    %743 = vmatprep.subr.bf16.mxu0 0
    %744 = vmatpush1.bf16.msra.mxu0 0
    %745 = vmatprep.subr.bf16.mxu0 0
    %746 = vmatpush1.bf16.msra.mxu0 0
    %747 = vmatprep.subr.bf16.mxu0 0
    %748 = vmatpush1.bf16.msra.mxu0 0
    %749 = vmatprep.mubr.bf16.mxu0 0
    %750 = vmatmul.mubr.bf16.gmra.mrb[0].mxu0 %v716
    %v751 = vpop.f32.mrb[0].mxu0
    %v752 = vadd.f32 0.0, %v751
    %v753 = vpop.f32.mrb[0].mxu0
    %v754 = vadd.f32 0.0, %v753
    %v755 = vpop.f32.mrb[0].mxu0
    %v756 = vpop.f32.mrb[0].mxu0
    %757 = vdwg.mxu0
    %758 = vmatprep.subr.bf16.mxu0 %v185
    %759 = vmatpush1.bf16.msra.mxu0 %v184
    %760 = vmatprep.subr.bf16.mxu0 %v189
    %761 = vmatpush1.bf16.msra.mxu0 %v188
    %762 = vmatprep.subr.bf16.mxu0 %v193
    %763 = vmatpush1.bf16.msra.mxu0 %v192
    %764 = vmatprep.subr.bf16.mxu0 %v197
    %765 = vmatpush1.bf16.msra.mxu0 %v196
    %766 = vmatprep.subr.bf16.mxu0 %v201
    %767 = vmatpush1.bf16.msra.mxu0 %v200
    %768 = vmatprep.subr.bf16.mxu0 %v205
    %769 = vmatpush1.bf16.msra.mxu0 %v204
    %770 = vmatprep.subr.bf16.mxu0 %v209
    %771 = vmatpush1.bf16.msra.mxu0 %v208
    %772 = vmatprep.subr.bf16.mxu0 %v213
    %773 = vmatpush1.bf16.msra.mxu0 %v212
    %774 = vmatprep.subr.bf16.mxu0 0
    %775 = vmatpush1.bf16.msra.mxu0 0
    %776 = vmatprep.subr.bf16.mxu0 0
    %777 = vmatpush1.bf16.msra.mxu0 0
    %778 = vmatprep.subr.bf16.mxu0 0
    %779 = vmatpush1.bf16.msra.mxu0 0
    %780 = vmatprep.subr.bf16.mxu0 0
    %781 = vmatpush1.bf16.msra.mxu0 0
    %782 = vmatprep.subr.bf16.mxu0 0
    %783 = vmatpush1.bf16.msra.mxu0 0
    %784 = vmatprep.subr.bf16.mxu0 0
    %785 = vmatpush1.bf16.msra.mxu0 0
    %786 = vmatprep.subr.bf16.mxu0 0
    %787 = vmatpush1.bf16.msra.mxu0 0
    %788 = vmatprep.subr.bf16.mxu0 0
    %789 = vmatpush1.bf16.msra.mxu0 0
    %790 = vmatprep.mubr.bf16.mxu0 0
    %791 = vmatmul.mubr.bf16.gmra.mrb[0].mxu0 %v716
    %v792 = vpop.f32.mrb[0].mxu0
    %v793 = vadd.f32 0.0, %v792
    %v794 = vpop.f32.mrb[0].mxu0
    %v795 = vadd.f32 0.0, %v794
    %v796 = vpop.f32.mrb[0].mxu0
    %v797 = vpop.f32.mrb[0].mxu0
    %798 = vdwg.mxu0
    %v799 = vadd.f32 %v712, %v752
    %v800 = vadd.f32 %v713, %v754
    %v801 = vadd.f32 %v714, %v793
    %v802 = vadd.f32 %v715, %v795
    %v803 = vxor.u32 %v799, 2147483648
    %v804 = vmul.f32 %v803, 1.442695
    %v805 = vpow.pop %v804
    %v806 = vadd.f32 %v805, 1.0
    %v807 = vrcp.pop %v806
    %v808 = vmul.f32 1.0, %v807
    %v809 = vxor.u32 %v800, 2147483648
    %v810 = vmul.f32 %v809, 1.442695
    %v811 = vpow.pop %v810
    %v812 = vadd.f32 %v811, 1.0
    %v813 = vrcp.pop %v812
    %v814 = vmul.f32 1.0, %v813
    %v815 = vtanh.pop %v801
    %v816 = vxor.u32 %v802, 2147483648
    %v817 = vmul.f32 %v816, 1.442695
    %v818 = vpow.pop %v817
    %v819 = vadd.f32 %v818, 1.0
    %v820 = vrcp.pop %v819
    %v821 = vmul.f32 1.0, %v820
    %v822 = vmul.f32 %v814, %v706
    %v823 = vmul.f32 %v808, %v815
    %v824 = vadd.f32 %v822, %v823
    %v825 = vtanh.pop %v824
    %v826 = vmul.f32 %v821, %v825
    %s827 = scalar_lea.vmem [#allocation9], 32
    %828 = vst [vmem:[%s827] sm:$0xff] %v826
    %s829 = scalar_lea.vmem [#allocation4], 160
    %v830 = vld [vmem:[%s829] sm:$0xff]
    %v831 = vld [vmem:[%s829 + $0x8] sm:$0xff]
    %v832 = vld [vmem:[%s829 + $0x10] sm:$0xff]
    %v833 = vld [vmem:[%s829 + $0x18] sm:$0xff]
    %v834 = vpack.c.bf16 %v826, %v826
    %835 = vmatprep.subr.bf16.mxu0 %v183
    %836 = vmatpush1.bf16.msra.mxu0 %v182
    %837 = vmatprep.subr.bf16.mxu0 %v187
    %838 = vmatpush1.bf16.msra.mxu0 %v186
    %839 = vmatprep.subr.bf16.mxu0 %v191
    %840 = vmatpush1.bf16.msra.mxu0 %v190
    %841 = vmatprep.subr.bf16.mxu0 %v195
    %842 = vmatpush1.bf16.msra.mxu0 %v194
    %843 = vmatprep.subr.bf16.mxu0 %v199
    %844 = vmatpush1.bf16.msra.mxu0 %v198
    %845 = vmatprep.subr.bf16.mxu0 %v203
    %846 = vmatpush1.bf16.msra.mxu0 %v202
    %847 = vmatprep.subr.bf16.mxu0 %v207
    %848 = vmatpush1.bf16.msra.mxu0 %v206
    %849 = vmatprep.subr.bf16.mxu0 %v211
    %850 = vmatpush1.bf16.msra.mxu0 %v210
    %851 = vmatprep.subr.bf16.mxu0 0
    %852 = vmatpush1.bf16.msra.mxu0 0
    %853 = vmatprep.subr.bf16.mxu0 0
    %854 = vmatpush1.bf16.msra.mxu0 0
    %855 = vmatprep.subr.bf16.mxu0 0
    %856 = vmatpush1.bf16.msra.mxu0 0
    %857 = vmatprep.subr.bf16.mxu0 0
    %858 = vmatpush1.bf16.msra.mxu0 0
    %859 = vmatprep.subr.bf16.mxu0 0
    %860 = vmatpush1.bf16.msra.mxu0 0
    %861 = vmatprep.subr.bf16.mxu0 0
    %862 = vmatpush1.bf16.msra.mxu0 0
    %863 = vmatprep.subr.bf16.mxu0 0
    %864 = vmatpush1.bf16.msra.mxu0 0
    %865 = vmatprep.subr.bf16.mxu0 0
    %866 = vmatpush1.bf16.msra.mxu0 0
    %867 = vmatprep.mubr.bf16.mxu0 0
    %868 = vmatmul.mubr.bf16.gmra.mrb[0].mxu0 %v834
    %v869 = vpop.f32.mrb[0].mxu0
    %v870 = vadd.f32 0.0, %v869
    %v871 = vpop.f32.mrb[0].mxu0
    %v872 = vadd.f32 0.0, %v871
    %v873 = vpop.f32.mrb[0].mxu0
    %v874 = vpop.f32.mrb[0].mxu0
    %875 = vdwg.mxu0
    %876 = vmatprep.subr.bf16.mxu0 %v185
    %877 = vmatpush1.bf16.msra.mxu0 %v184
    %878 = vmatprep.subr.bf16.mxu0 %v189
    %879 = vmatpush1.bf16.msra.mxu0 %v188
    %880 = vmatprep.subr.bf16.mxu0 %v193
    %881 = vmatpush1.bf16.msra.mxu0 %v192
    %882 = vmatprep.subr.bf16.mxu0 %v197
    %883 = vmatpush1.bf16.msra.mxu0 %v196
    %884 = vmatprep.subr.bf16.mxu0 %v201
    %885 = vmatpush1.bf16.msra.mxu0 %v200
    %886 = vmatprep.subr.bf16.mxu0 %v205
    %887 = vmatpush1.bf16.msra.mxu0 %v204
    %888 = vmatprep.subr.bf16.mxu0 %v209
    %889 = vmatpush1.bf16.msra.mxu0 %v208
    %890 = vmatprep.subr.bf16.mxu0 %v213
    %891 = vmatpush1.bf16.msra.mxu0 %v212
    %892 = vmatprep.subr.bf16.mxu0 0
    %893 = vmatpush1.bf16.msra.mxu0 0
    %894 = vmatprep.subr.bf16.mxu0 0
    %895 = vmatpush1.bf16.msra.mxu0 0
    %896 = vmatprep.subr.bf16.mxu0 0
    %897 = vmatpush1.bf16.msra.mxu0 0
    %898 = vmatprep.subr.bf16.mxu0 0
    %899 = vmatpush1.bf16.msra.mxu0 0
    %900 = vmatprep.subr.bf16.mxu0 0
    %901 = vmatpush1.bf16.msra.mxu0 0
    %902 = vmatprep.subr.bf16.mxu0 0
    %903 = vmatpush1.bf16.msra.mxu0 0
    %904 = vmatprep.subr.bf16.mxu0 0
    %905 = vmatpush1.bf16.msra.mxu0 0
    %906 = vmatprep.subr.bf16.mxu0 0
    %907 = vmatpush1.bf16.msra.mxu0 0
    %908 = vmatprep.mubr.bf16.mxu0 0
    %909 = vmatmul.mubr.bf16.gmra.mrb[0].mxu0 %v834
    %v910 = vpop.f32.mrb[0].mxu0
    %v911 = vadd.f32 0.0, %v910
    %v912 = vpop.f32.mrb[0].mxu0
    %v913 = vadd.f32 0.0, %v912
    %v914 = vpop.f32.mrb[0].mxu0
    %v915 = vpop.f32.mrb[0].mxu0
    %916 = vdwg.mxu0
    %v917 = vadd.f32 %v830, %v870
    %v918 = vadd.f32 %v831, %v872
    %v919 = vadd.f32 %v832, %v911
    %v920 = vadd.f32 %v833, %v913
    %v921 = vxor.u32 %v917, 2147483648
    %v922 = vmul.f32 %v921, 1.442695
    %v923 = vpow.pop %v922
    %v924 = vadd.f32 %v923, 1.0
    %v925 = vrcp.pop %v924
    %v926 = vmul.f32 1.0, %v925
    %v927 = vxor.u32 %v918, 2147483648
    %v928 = vmul.f32 %v927, 1.442695
    %v929 = vpow.pop %v928
    %v930 = vadd.f32 %v929, 1.0
    %v931 = vrcp.pop %v930
    %v932 = vmul.f32 1.0, %v931
    %v933 = vtanh.pop %v919
    %v934 = vxor.u32 %v920, 2147483648
    %v935 = vmul.f32 %v934, 1.442695
    %v936 = vpow.pop %v935
    %v937 = vadd.f32 %v936, 1.0
    %v938 = vrcp.pop %v937
    %v939 = vmul.f32 1.0, %v938
    %v940 = vmul.f32 %v932, %v824
    %v941 = vmul.f32 %v926, %v933
    %v942 = vadd.f32 %v940, %v941
    %v943 = vtanh.pop %v942
    %v944 = vmul.f32 %v939, %v943
    %s945 = scalar_lea.vmem [#allocation9], 40
    %946 = vst [vmem:[%s945] sm:$0xff] %v944
    %s947 = scalar_lea.vmem [#allocation4], 192
    %v948 = vld [vmem:[%s947] sm:$0xff]
    %v949 = vld [vmem:[%s947 + $0x8] sm:$0xff]
    %v950 = vld [vmem:[%s947 + $0x10] sm:$0xff]
    %v951 = vld [vmem:[%s947 + $0x18] sm:$0xff]
    %v952 = vpack.c.bf16 %v944, %v944
    %953 = vmatprep.subr.bf16.mxu0 %v183
    %954 = vmatpush1.bf16.msra.mxu0 %v182
    %955 = vmatprep.subr.bf16.mxu0 %v187
    %956 = vmatpush1.bf16.msra.mxu0 %v186
    %957 = vmatprep.subr.bf16.mxu0 %v191
    %958 = vmatpush1.bf16.msra.mxu0 %v190
    %959 = vmatprep.subr.bf16.mxu0 %v195
    %960 = vmatpush1.bf16.msra.mxu0 %v194
    %961 = vmatprep.subr.bf16.mxu0 %v199
    %962 = vmatpush1.bf16.msra.mxu0 %v198
    %963 = vmatprep.subr.bf16.mxu0 %v203
    %964 = vmatpush1.bf16.msra.mxu0 %v202
    %965 = vmatprep.subr.bf16.mxu0 %v207
    %966 = vmatpush1.bf16.msra.mxu0 %v206
    %967 = vmatprep.subr.bf16.mxu0 %v211
    %968 = vmatpush1.bf16.msra.mxu0 %v210
    %969 = vmatprep.subr.bf16.mxu0 0
    %970 = vmatpush1.bf16.msra.mxu0 0
    %971 = vmatprep.subr.bf16.mxu0 0
    %972 = vmatpush1.bf16.msra.mxu0 0
    %973 = vmatprep.subr.bf16.mxu0 0
    %974 = vmatpush1.bf16.msra.mxu0 0
    %975 = vmatprep.subr.bf16.mxu0 0
    %976 = vmatpush1.bf16.msra.mxu0 0
    %977 = vmatprep.subr.bf16.mxu0 0
    %978 = vmatpush1.bf16.msra.mxu0 0
    %979 = vmatprep.subr.bf16.mxu0 0
    %980 = vmatpush1.bf16.msra.mxu0 0
    %981 = vmatprep.subr.bf16.mxu0 0
    %982 = vmatpush1.bf16.msra.mxu0 0
    %983 = vmatprep.subr.bf16.mxu0 0
    %984 = vmatpush1.bf16.msra.mxu0 0
    %985 = vmatprep.mubr.bf16.mxu0 0
    %986 = vmatmul.mubr.bf16.gmra.mrb[0].mxu0 %v952
    %v987 = vpop.f32.mrb[0].mxu0
    %v988 = vadd.f32 0.0, %v987
    %v989 = vpop.f32.mrb[0].mxu0
    %v990 = vadd.f32 0.0, %v989
    %v991 = vpop.f32.mrb[0].mxu0
    %v992 = vpop.f32.mrb[0].mxu0
    %993 = vdwg.mxu0
    %994 = vmatprep.subr.bf16.mxu0 %v185
    %995 = vmatpush1.bf16.msra.mxu0 %v184
    %996 = vmatprep.subr.bf16.mxu0 %v189
    %997 = vmatpush1.bf16.msra.mxu0 %v188
    %998 = vmatprep.subr.bf16.mxu0 %v193
    %999 = vmatpush1.bf16.msra.mxu0 %v192
    %1000 = vmatprep.subr.bf16.mxu0 %v197
    %1001 = vmatpush1.bf16.msra.mxu0 %v196
    %1002 = vmatprep.subr.bf16.mxu0 %v201
    %1003 = vmatpush1.bf16.msra.mxu0 %v200
    %1004 = vmatprep.subr.bf16.mxu0 %v205
    %1005 = vmatpush1.bf16.msra.mxu0 %v204
    %1006 = vmatprep.subr.bf16.mxu0 %v209
    %1007 = vmatpush1.bf16.msra.mxu0 %v208
    %1008 = vmatprep.subr.bf16.mxu0 %v213
    %1009 = vmatpush1.bf16.msra.mxu0 %v212
    %1010 = vmatprep.subr.bf16.mxu0 0
    %1011 = vmatpush1.bf16.msra.mxu0 0
    %1012 = vmatprep.subr.bf16.mxu0 0
    %1013 = vmatpush1.bf16.msra.mxu0 0
    %1014 = vmatprep.subr.bf16.mxu0 0
    %1015 = vmatpush1.bf16.msra.mxu0 0
    %1016 = vmatprep.subr.bf16.mxu0 0
    %1017 = vmatpush1.bf16.msra.mxu0 0
    %1018 = vmatprep.subr.bf16.mxu0 0
    %1019 = vmatpush1.bf16.msra.mxu0 0
    %1020 = vmatprep.subr.bf16.mxu0 0
    %1021 = vmatpush1.bf16.msra.mxu0 0
    %1022 = vmatprep.subr.bf16.mxu0 0
    %1023 = vmatpush1.bf16.msra.mxu0 0
    %1024 = vmatprep.subr.bf16.mxu0 0
    %1025 = vmatpush1.bf16.msra.mxu0 0
    %1026 = vmatprep.mubr.bf16.mxu0 0
    %1027 = vmatmul.mubr.bf16.gmra.mrb[0].mxu0 %v952
    %v1028 = vpop.f32.mrb[0].mxu0
    %v1029 = vadd.f32 0.0, %v1028
    %v1030 = vpop.f32.mrb[0].mxu0
    %v1031 = vadd.f32 0.0, %v1030
    %v1032 = vpop.f32.mrb[0].mxu0
    %v1033 = vpop.f32.mrb[0].mxu0
    %1034 = vdwg.mxu0
    %v1035 = vadd.f32 %v948, %v988
    %v1036 = vadd.f32 %v949, %v990
    %v1037 = vadd.f32 %v950, %v1029
    %v1038 = vadd.f32 %v951, %v1031
    %v1039 = vxor.u32 %v1035, 2147483648
    %v1040 = vmul.f32 %v1039, 1.442695
    %v1041 = vpow.pop %v1040
    %v1042 = vadd.f32 %v1041, 1.0
    %v1043 = vrcp.pop %v1042
    %v1044 = vmul.f32 1.0, %v1043
    %v1045 = vxor.u32 %v1036, 2147483648
    %v1046 = vmul.f32 %v1045, 1.442695
    %v1047 = vpow.pop %v1046
    %v1048 = vadd.f32 %v1047, 1.0
    %v1049 = vrcp.pop %v1048
    %v1050 = vmul.f32 1.0, %v1049
    %v1051 = vtanh.pop %v1037
    %v1052 = vxor.u32 %v1038, 2147483648
    %v1053 = vmul.f32 %v1052, 1.442695
    %v1054 = vpow.pop %v1053
    %v1055 = vadd.f32 %v1054, 1.0
    %v1056 = vrcp.pop %v1055
    %v1057 = vmul.f32 1.0, %v1056
    %v1058 = vmul.f32 %v1050, %v942
    %v1059 = vmul.f32 %v1044, %v1051
    %v1060 = vadd.f32 %v1058, %v1059
    %v1061 = vtanh.pop %v1060
    %v1062 = vmul.f32 %v1057, %v1061
    %s1063 = scalar_lea.vmem [#allocation9], 48
    %1064 = vst [vmem:[%s1063] sm:$0xff] %v1062
    %s1065 = scalar_lea.vmem [#allocation4], 224
    %v1066 = vld [vmem:[%s1065] sm:$0xff]
    %v1067 = vld [vmem:[%s1065 + $0x8] sm:$0xff]
    %v1068 = vld [vmem:[%s1065 + $0x10] sm:$0xff]
    %v1069 = vld [vmem:[%s1065 + $0x18] sm:$0xff]
    %v1070 = vpack.c.bf16 %v1062, %v1062
    %1071 = vmatprep.subr.bf16.mxu0 %v183
    %1072 = vmatpush1.bf16.msra.mxu0 %v182
    %1073 = vmatprep.subr.bf16.mxu0 %v187
    %1074 = vmatpush1.bf16.msra.mxu0 %v186
    %1075 = vmatprep.subr.bf16.mxu0 %v191
    %1076 = vmatpush1.bf16.msra.mxu0 %v190
    %1077 = vmatprep.subr.bf16.mxu0 %v195
    %1078 = vmatpush1.bf16.msra.mxu0 %v194
    %1079 = vmatprep.subr.bf16.mxu0 %v199
    %1080 = vmatpush1.bf16.msra.mxu0 %v198
    %1081 = vmatprep.subr.bf16.mxu0 %v203
    %1082 = vmatpush1.bf16.msra.mxu0 %v202
    %1083 = vmatprep.subr.bf16.mxu0 %v207
    %1084 = vmatpush1.bf16.msra.mxu0 %v206
    %1085 = vmatprep.subr.bf16.mxu0 %v211
    %1086 = vmatpush1.bf16.msra.mxu0 %v210
    %1087 = vmatprep.subr.bf16.mxu0 0
    %1088 = vmatpush1.bf16.msra.mxu0 0
    %1089 = vmatprep.subr.bf16.mxu0 0
    %1090 = vmatpush1.bf16.msra.mxu0 0
    %1091 = vmatprep.subr.bf16.mxu0 0
    %1092 = vmatpush1.bf16.msra.mxu0 0
    %1093 = vmatprep.subr.bf16.mxu0 0
    %1094 = vmatpush1.bf16.msra.mxu0 0
    %1095 = vmatprep.subr.bf16.mxu0 0
    %1096 = vmatpush1.bf16.msra.mxu0 0
    %1097 = vmatprep.subr.bf16.mxu0 0
    %1098 = vmatpush1.bf16.msra.mxu0 0
    %1099 = vmatprep.subr.bf16.mxu0 0
    %1100 = vmatpush1.bf16.msra.mxu0 0
    %1101 = vmatprep.subr.bf16.mxu0 0
    %1102 = vmatpush1.bf16.msra.mxu0 0
    %1103 = vmatprep.mubr.bf16.mxu0 0
    %1104 = vmatmul.mubr.bf16.gmra.mrb[0].mxu0 %v1070
    %v1105 = vpop.f32.mrb[0].mxu0
    %v1106 = vadd.f32 0.0, %v1105
    %v1107 = vpop.f32.mrb[0].mxu0
    %v1108 = vadd.f32 0.0, %v1107
    %v1109 = vpop.f32.mrb[0].mxu0
    %v1110 = vpop.f32.mrb[0].mxu0
    %1111 = vdwg.mxu0
    %1112 = vmatprep.subr.bf16.mxu0 %v185
    %1113 = vmatpush1.bf16.msra.mxu0 %v184
    %1114 = vmatprep.subr.bf16.mxu0 %v189
    %1115 = vmatpush1.bf16.msra.mxu0 %v188
    %1116 = vmatprep.subr.bf16.mxu0 %v193
    %1117 = vmatpush1.bf16.msra.mxu0 %v192
    %1118 = vmatprep.subr.bf16.mxu0 %v197
    %1119 = vmatpush1.bf16.msra.mxu0 %v196
    %1120 = vmatprep.subr.bf16.mxu0 %v201
    %1121 = vmatpush1.bf16.msra.mxu0 %v200
    %1122 = vmatprep.subr.bf16.mxu0 %v205
    %1123 = vmatpush1.bf16.msra.mxu0 %v204
    %1124 = vmatprep.subr.bf16.mxu0 %v209
    %1125 = vmatpush1.bf16.msra.mxu0 %v208
    %1126 = vmatprep.subr.bf16.mxu0 %v213
    %1127 = vmatpush1.bf16.msra.mxu0 %v212
    %1128 = vmatprep.subr.bf16.mxu0 0
    %1129 = vmatpush1.bf16.msra.mxu0 0
    %1130 = vmatprep.subr.bf16.mxu0 0
    %1131 = vmatpush1.bf16.msra.mxu0 0
    %1132 = vmatprep.subr.bf16.mxu0 0
    %1133 = vmatpush1.bf16.msra.mxu0 0
    %1134 = vmatprep.subr.bf16.mxu0 0
    %1135 = vmatpush1.bf16.msra.mxu0 0
    %1136 = vmatprep.subr.bf16.mxu0 0
    %1137 = vmatpush1.bf16.msra.mxu0 0
    %1138 = vmatprep.subr.bf16.mxu0 0
    %1139 = vmatpush1.bf16.msra.mxu0 0
    %1140 = vmatprep.subr.bf16.mxu0 0
    %1141 = vmatpush1.bf16.msra.mxu0 0
    %1142 = vmatprep.subr.bf16.mxu0 0
    %1143 = vmatpush1.bf16.msra.mxu0 0
    %1144 = vmatprep.mubr.bf16.mxu0 0
    %1145 = vmatmul.mubr.bf16.gmra.mrb[0].mxu0 %v1070
    %v1146 = vpop.f32.mrb[0].mxu0
    %v1147 = vadd.f32 0.0, %v1146
    %v1148 = vpop.f32.mrb[0].mxu0
    %v1149 = vadd.f32 0.0, %v1148
    %v1150 = vpop.f32.mrb[0].mxu0
    %v1151 = vpop.f32.mrb[0].mxu0
    %1152 = vdwg.mxu0
    %v1153 = vadd.f32 %v1066, %v1106
    %v1154 = vadd.f32 %v1067, %v1108
    %v1155 = vadd.f32 %v1068, %v1147
    %v1156 = vadd.f32 %v1069, %v1149
    %v1157 = vxor.u32 %v1153, 2147483648
    %v1158 = vmul.f32 %v1157, 1.442695
    %v1159 = vpow.pop %v1158
    %v1160 = vadd.f32 %v1159, 1.0
    %v1161 = vrcp.pop %v1160
    %v1162 = vmul.f32 1.0, %v1161
    %v1163 = vxor.u32 %v1154, 2147483648
    %v1164 = vmul.f32 %v1163, 1.442695
    %v1165 = vpow.pop %v1164
    %v1166 = vadd.f32 %v1165, 1.0
    %v1167 = vrcp.pop %v1166
    %v1168 = vmul.f32 1.0, %v1167
    %v1169 = vtanh.pop %v1155
    %v1170 = vxor.u32 %v1156, 2147483648
    %v1171 = vmul.f32 %v1170, 1.442695
    %v1172 = vpow.pop %v1171
    %v1173 = vadd.f32 %v1172, 1.0
    %v1174 = vrcp.pop %v1173
    %v1175 = vmul.f32 1.0, %v1174
    %v1176 = vmul.f32 %v1168, %v1060
    %v1177 = vmul.f32 %v1162, %v1169
    %v1178 = vadd.f32 %v1176, %v1177
    %v1179 = vtanh.pop %v1178
    %v1180 = vmul.f32 %v1175, %v1179
    %s1181 = scalar_lea.vmem [#allocation9], 56
    %1182 = vst [vmem:[%s1181] sm:$0xff] %v1180
    %1183 = vst [vmem:[#allocation2] sm:$0xff] %v1180
    %1184 = vst [vmem:[#allocation3] sm:$0xff] %v1178
    // Predicated region
    $region22: #{tpu_custom_call.1} parent=1 // pred_check
      _
    $region23: #{tpu_custom_call.1} parent=1 // pred_check_branch
      %1186 = sbr.rel (0) target = $region25
    $region24: #{tpu_custom_call.1} parent=1 // pred_region
      %s1188 = ssub.s32 1024, 1024
      %1189 = vsyncadd [#allocation6], %s1188
      %s1190 = sshll.u32 [#allocation9], 4
      %s1191 = int_to_ptr.vmem [resolvable:$true] %s1190
      %1196 = dma.vmem_to_hbm [thread:$0]  %s1191, 1024, %s2, [#allocation6], 128, 128, 8
    $region25: #{tpu_custom_call.1} parent=1 // pred_fallthru
      _
    // Predicated region
    $region26: #{tpu_custom_call.1} parent=1 // pred_check
      _
    $region27: #{tpu_custom_call.1} parent=1 // pred_check_branch
      %1198 = sbr.rel (0) target = $region29
    $region28: #{tpu_custom_call.1} parent=1 // pred_region
      %1199 = dma.done [#allocation6], 1024
    $region29: #{tpu_custom_call.1} parent=1 // pred_fallthru
      _
    %1200 = vsyncpa [#allocation5], 1
    %1201 = vsyncpa [#allocation8], 1
    %1202 = vsyncpa [#allocation6], 1

</llo_original>
